<compile_context>
chip_gen: v7x
topology: tpu7x:2x2x1
jax: 0.10.0
libtpu: 0.0.40
codegen_flags: <defaults>
</compile_context>

<pallas_src>
import functools

import jax
import jax.numpy as jnp
from jax import lax
from jax.experimental import pallas as pl
from jax.experimental.pallas import tpu as pltpu


# --------------------------------------------------------------------------- #
# one-time capability / hardware probes
# --------------------------------------------------------------------------- #
@functools.lru_cache(maxsize=None)
def _buffered_weights_supported() -> bool:
    """Probe (by lowering a tiny dummy) whether BlockSpec accepts
    pipeline_mode=pl.Buffered(1) for single-buffered, VMEM-resident weights."""
    if not hasattr(pl, "Buffered"):
        return False
    try:
        def k(w_ref, o_ref):
            o_ref[...] = w_ref[...] + 1.0

        fn = pl.pallas_call(
            k,
            out_shape=jax.ShapeDtypeStruct((16, 128), jnp.float32),
            grid=(2,),
            in_specs=[pl.BlockSpec((8, 128), lambda i: (0, 0),
                                   pipeline_mode=pl.Buffered(1))],
            out_specs=pl.BlockSpec((8, 128), lambda i: (i, 0)),
        )
        jax.jit(fn).lower(jax.ShapeDtypeStruct((8, 128), jnp.float32))
        return True
    except Exception:
        return False


@functools.lru_cache(maxsize=None)
def _vmem_capacity_bytes() -> int:
    try:
        return int(pltpu.get_tpu_info().vmem_capacity_bytes)
    except Exception:
        return 64 << 20  # conservative: v7x has 64 MiB per TensorCore


def _round_up(a: int, m: int) -> int:
    return ((a + m - 1) // m) * m


# --------------------------------------------------------------------------- #
# VMEM budgeting
# --------------------------------------------------------------------------- #
def _estimate_vmem_bytes(B, Lp, C, x_itemsize, out_itemsize, single_buffer_weights):
    wbuf = 1 if single_buffer_weights else 2
    weights = wbuf * (12 * C * C) * 2                    # bf16 weight matrices
    vectors = 2 * (13 * C) * 4                           # biases + LN params (f32)
    io = 2 * B * Lp * C * (x_itemsize + out_itemsize)    # double-buffered x / out
    scratch = B * Lp * C * (2 + 4)                       # ctx (bf16) + x1 (f32)
    # stage-local live temporaries (per batch element for attn / MLP):
    stage_attn = Lp * 3 * C * (4 + 2) + 6 * Lp * Lp * 4 + 2 * Lp * C * 4
    stage_oproj = 2 * B * Lp * C * 4 + B * Lp * C * 2
    stage_mlp = Lp * 4 * C * (4 + 2) + 3 * Lp * C * 4
    return weights + vectors + io + scratch + max(stage_attn, stage_oproj, stage_mlp)


def _select_batch_block(N, Lp, C, x_itemsize, out_itemsize, single_buffer):
    cap = _vmem_capacity_bytes()
    fitting = [b for b in range(min(N, 8), 0, -1)
               if N % b == 0
               and _estimate_vmem_bytes(b, Lp, C, x_itemsize, out_itemsize,
                                        single_buffer) <= int(cap * 0.75)]
    if not fitting:
        return 1
    # Prefer >= 2 grid steps so ("parallel",) can shard across v7x's two TCs and
    # the software pipeline has something to overlap with.
    multi_step = [b for b in fitting if N // b >= 2]
    return multi_step[0] if multi_step else fitting[0]


def _cost_estimate(N, Lp, C, H):
    flops = 2 * N * Lp * C * (12 * C) + 4 * N * Lp * Lp * C
    transcendentals = N * (H * Lp * Lp + 4 * Lp * C)
    bytes_accessed = 12 * C * C * 2 + 13 * C * 4 + 2 * N * Lp * C * 4
    return pl.CostEstimate(flops=int(flops),
                           transcendentals=int(transcendentals),
                           bytes_accessed=int(bytes_accessed))


# --------------------------------------------------------------------------- #
# kernel
# --------------------------------------------------------------------------- #
def _block_kernel(
    x_ref,
    ln1_g_ref, ln1_b_ref,
    wqkv_ref, bqkv_ref,        # 1/sqrt(D) already folded into the Q columns
    wo_ref, bo_ref,
    ln2_g_ref, ln2_b_ref,
    wfc_ref, bfc_ref,
    wpr_ref, bpr_ref,
    out_ref,
    ctx_ref,                   # VMEM scratch (B*L, C) bf16 : per-head contexts
    x1_ref,                    # VMEM scratch (B*L, C) f32  : x + attn_out
    *, num_heads, batch_block, seq_len, valid_len,
):
    B, L = batch_block, seq_len
    C = x_ref.shape[-1]
    H = num_heads
    D = C // H

    def layernorm(v, g, b):
        # LayerNorm subclass always computes in fp32 (torch default eps=1e-5).
        mu = jnp.mean(v, axis=-1, keepdims=True)
        var = jnp.mean(jnp.square(v - mu), axis=-1, keepdims=True)
        return (v - mu) * lax.rsqrt(var + 1e-5) * g + b

    # -inf bias on padded key columns (only emitted when the caller padded L).
    if valid_len < L:
        key_ids = lax.broadcasted_iota(jnp.int32, (1, L), 1)
        key_bias = jnp.where(key_ids < valid_len, 0.0, -1e30).astype(jnp.float32)
    else:
        key_bias = None

    pair = 2 if H % 2 == 0 else 1      # head-pair processing -> lane-dense stores
    group_w = pair * D

    # ------------- attention branch: LN1 + QKV + per-head attention ------------
    def attn_batch(b, carry):
        r0 = pl.multiple_of(b * L, 8)
        xb = x_ref[b].astype(jnp.float32)                                 # (L, C)
        yb = layernorm(xb, ln1_g_ref[...], ln1_b_ref[...])
        qkv = jnp.dot(yb.astype(jnp.bfloat16), wqkv_ref[...],
                      preferred_element_type=jnp.float32) + bqkv_ref[...]
        qkv = qkv.astype(jnp.bfloat16)                                    # (L, 3C)
        for g in range(H // pair):
            c0 = g * group_w
            qg = qkv[:, 0 * C + c0: 0 * C + c0 + group_w]
            kg = qkv[:, 1 * C + c0: 1 * C + c0 + group_w]
            vg = qkv[:, 2 * C + c0: 2 * C + c0 + group_w]
            parts = []
            for j in range(pair):
                qh = qg[:, j * D:(j + 1) * D]
                kh = kg[:, j * D:(j + 1) * D]
                vh = vg[:, j * D:(j + 1) * D]
                s = lax.dot_general(qh, kh, (((1,), (1,)), ((), ())),
                                    preferred_element_type=jnp.float32)   # (L, L)
                if key_bias is not None:
                    s = s + key_bias
                s = s - jnp.max(s, axis=-1, keepdims=True)
                p = jnp.exp(s)
                p = p * pl.reciprocal(jnp.sum(p, axis=-1, keepdims=True),
                                      approx=True)
                parts.append(jnp.dot(p.astype(jnp.bfloat16), vh,
                                     preferred_element_type=jnp.float32))
            ctx = parts[0] if pair == 1 else jnp.concatenate(parts, axis=-1)
            ctx_ref[pl.ds(r0, L), c0:c0 + group_w] = ctx.astype(ctx_ref.dtype)
        return carry

    lax.fori_loop(0, B, attn_batch, 0)

    # one big out-projection over all rows: (B*L, C) @ (C, C), full MXU depth
    attn_out = jnp.dot(ctx_ref[...], wo_ref[...],
                       preferred_element_type=jnp.float32) + bo_ref[...]
    x1_ref[...] = x_ref[...].astype(jnp.float32).reshape(B * L, C) + attn_out

    # ------------- MLP branch, row-tiled per batch element --------------------
    def mlp_batch(b, carry):
        r0 = pl.multiple_of(b * L, 8)
        x1 = x1_ref[pl.ds(r0, L), :]                                      # (L, C)
        y2 = layernorm(x1, ln2_g_ref[...], ln2_b_ref[...])
        h = jnp.dot(y2.astype(jnp.bfloat16), wfc_ref[...],
                    preferred_element_type=jnp.float32) + bfc_ref[...]    # (L, 4C)
        h = h * jax.nn.sigmoid(1.702 * h)                                 # QuickGELU
        mlp = jnp.dot(h.astype(jnp.bfloat16), wpr_ref[...],
                      preferred_element_type=jnp.float32) + bpr_ref[...]
        out_ref[b] = (x1 + mlp).astype(out_ref.dtype)
        return carry

    lax.fori_loop(0, B, mlp_batch, 0)


# --------------------------------------------------------------------------- #
# pallas_call wrapper
# --------------------------------------------------------------------------- #
def _call_kernel(x, params, num_heads, batch_block, valid_len, out_dtype,
                 single_buffer_weights):
    N, Lp, C = x.shape
    B = batch_block
    D = C // num_heads
    f32, bf16 = jnp.float32, jnp.bfloat16

    # Fold 1/sqrt(D) into the Q third of the QKV projection (kills B*H*L*L muls).
    scale = D ** -0.5
    wqkv = jnp.asarray(params["wqkv"], f32).at[:, :C].multiply(scale)
    bqkv = jnp.asarray(params["bqkv"], f32).at[:, :C].multiply(scale)

    def const_spec(shape):
        idx = lambda n, _r=len(shape): (0,) * _r
        if single_buffer_weights:
            # Constant index_map across the grid -> never needs a second buffer.
            return pl.BlockSpec(shape, idx, pipeline_mode=pl.Buffered(1))
        return pl.BlockSpec(shape, idx)

    kernel = functools.partial(_block_kernel, num_heads=num_heads, batch_block=B,
                               seq_len=Lp, valid_len=valid_len)

    cap = _vmem_capacity_bytes()
    est = _estimate_vmem_bytes(B, Lp, C, x.dtype.itemsize,
                               jnp.dtype(out_dtype).itemsize,
                               single_buffer_weights)
    vmem_limit = min(max(int(est * 1.25), 32 << 20), int(cap * 0.9))

    return pl.pallas_call(
        kernel,
        out_shape=jax.ShapeDtypeStruct((N, Lp, C), out_dtype),
        grid=(N // B,),
        in_specs=[
            pl.BlockSpec((B, Lp, C), lambda n: (n, 0, 0)),    # x (B batch elems)
            const_spec((1, C)), const_spec((1, C)),           # ln_1 gamma / beta
            const_spec((C, 3 * C)), const_spec((1, 3 * C)),   # attn.in_proj (W^T, b)
            const_spec((C, C)), const_spec((1, C)),           # attn.out_proj
            const_spec((1, C)), const_spec((1, C)),           # ln_2 gamma / beta
            const_spec((C, 4 * C)), const_spec((1, 4 * C)),   # mlp.c_fc
            const_spec((4 * C, C)), const_spec((1, C)),       # mlp.c_proj
        ],
        out_specs=pl.BlockSpec((B, Lp, C), lambda n: (n, 0, 0)),
        scratch_shapes=[
            pltpu.VMEM((B * Lp, C), bf16),    # per-head context
            pltpu.VMEM((B * Lp, C), f32),     # x + attn_out residual
        ],
        compiler_params=pltpu.CompilerParams(
            dimension_semantics=("parallel",),
            vmem_limit_bytes=vmem_limit),
        cost_estimate=_cost_estimate(N, Lp, C, num_heads),
    )(x,
      jnp.asarray(params["ln1_g"], f32), jnp.asarray(params["ln1_b"], f32),
      wqkv.astype(bf16), bqkv,
      jnp.asarray(params["wo"], bf16), jnp.asarray(params["bo"], f32),
      jnp.asarray(params["ln2_g"], f32), jnp.asarray(params["ln2_b"], f32),
      jnp.asarray(params["wfc"], bf16), jnp.asarray(params["bfc"], f32),
      jnp.asarray(params["wpr"], bf16), jnp.asarray(params["bpr"], f32))


def custom_residual_attention_block(x_nlc, params, num_heads, *,
                                    batch_block=None, seq_pad_multiple=8,
                                    out_dtype=None):
    """Forward pass of CustomResidualAttentionBlock (attn_mask=None, eval mode).

    x_nlc: (N, L, C), batch-first.  At real CLIP sizes (L = 197 / 257) pass
    seq_pad_multiple=128 for lane-aligned score tiles (padded keys are masked
    with -inf inside the kernel and padded rows are sliced off the output).
    """
    N, L, C = x_nlc.shape
    if C % num_heads != 0:
        raise ValueError("d_model must be divisible by n_head")
    out_dtype = x_nlc.dtype if out_dtype is None else jnp.dtype(out_dtype)

    m = max(int(seq_pad_multiple), 1)
    Lp = _round_up(_round_up(L, m), 8)        # keep pl.multiple_of(row, 8) truthful
    x_pad = x_nlc if Lp == L else jnp.pad(x_nlc, ((0, 0), (0, Lp - L), (0, 0)))

    single_buffer = _buffered_weights_supported()
    if batch_block is None:
        batch_block = _select_batch_block(N, Lp, C, x_pad.dtype.itemsize,
                                          out_dtype.itemsize, single_buffer)
    if N % batch_block != 0:
        raise ValueError(f"batch_block={batch_block} must divide batch N={N}")

    out = _call_kernel(x_pad, params, num_heads, batch_block, L, out_dtype,
                       single_buffer)
    return out if Lp == L else out[:, :L, :]


# --------------------------------------------------------------------------- #
# pure-JAX reference + parameter construction (for the self-test)
# --------------------------------------------------------------------------- #
def _reference(x_nlc, params, num_heads):
    """f32 reference matching the PyTorch forward (attn_mask=None, eval mode)."""
    N, L, C = x_nlc.shape
    D = C // num_heads

    def ln(v, g, b):
        mu = v.mean(-1, keepdims=True)
        var = ((v - mu) ** 2).mean(-1, keepdims=True)
        return (v - mu) / jnp.sqrt(var + 1e-5) * g[0] + b[0]

    y = ln(x_nlc, params["ln1_g"], params["ln1_b"])
    qkv = y @ params["wqkv"] + params["bqkv"][0]
    q, k, v = jnp.split(qkv, 3, axis=-1)

    def heads(t):
        return jnp.transpose(t.reshape(N, L, num_heads, D), (0, 2, 1, 3))

    qh = heads(q) * D ** -0.5
    kh, vh = heads(k), heads(v)
    s = jnp.einsum("nhld,nhmd->nhlm", qh, kh)
    p = jax.nn.softmax(s, axis=-1)
    ctx = jnp.einsum("nhlm,nhmd->nhld", p, vh)
    ctx = jnp.transpose(ctx, (0, 2, 1, 3)).reshape(N, L, C)
    x1 = x_nlc + (ctx @ params["wo"] + params["bo"][0])
    y2 = ln(x1, params["ln2_g"], params["ln2_b"])
    h = y2 @ params["wfc"] + params["bfc"][0]
    h = h * jax.nn.sigmoid(1.702 * h)
    return x1 + (h @ params["wpr"] + params["bpr"][0])


def _make_params(key, d_model):
    C = d_model
    ks = jax.random.split(key, 12)
    n = lambda k, shape, s=0.02: (s * jax.random.normal(k, shape)).astype(jnp.float32)
    return {
        "ln1_g": 1.0 + n(ks[0], (1, C)), "ln1_b": n(ks[1], (1, C)),
        "wqkv": n(ks[2], (C, 3 * C)),    "bqkv": n(ks[3], (1, 3 * C)),
        "wo": n(ks[4], (C, C)),          "bo": n(ks[5], (1, C)),
        "ln2_g": 1.0 + n(ks[6], (1, C)), "ln2_b": n(ks[7], (1, C)),
        "wfc": n(ks[8], (C, 4 * C)),     "bfc": n(ks[9], (1, 4 * C)),
        "wpr": n(ks[10], (4 * C, C)),    "bpr": n(ks[11], (1, C)),
    }


if __name__ == "__main__":
    # TODO(synk): dropout (eval-mode no-op), LoRA / scaled_cosine / head_scale
    # branches and return_attn are not implemented (module defaults exercised).
    L, N, C, H = 8, 2, 32, 4          # seq, batch, d_model, n_head (small test)
    key = jax.random.PRNGKey(0)
    kx, kp = jax.random.split(key)
    x = jax.random.normal(kx, (N, L, C), dtype=jnp.float32)   # batch-first (N, L, C)
    params = _make_params(kp, C)

    out = custom_residual_attention_block(x, params, num_heads=H)
    out = jax.block_until_ready(out)

    ref = _reference(x, params, num_heads=H)
    assert out.shape == (N, L, C)
    max_err = float(jnp.max(jnp.abs(out - ref)))
    # bf16 matmul operands / f32 accumulation vs. the all-f32 reference.
    assert jnp.allclose(out, ref, atol=1e-2, rtol=1e-2), max_err

    print("KERNEL_OK")
</pallas_src>

<mosaic_0001>
module attributes {stable_mosaic.version = 11 : i64} {
  func.func @_block_kernel(%arg0: i32, %arg1: memref<1x8x32xf32, #tpu.memory_space<vmem>>, %arg2: memref<1x32xf32, #tpu.memory_space<vmem>>, %arg3: memref<1x32xf32, #tpu.memory_space<vmem>>, %arg4: memref<32x96xbf16, #tpu.memory_space<vmem>>, %arg5: memref<1x96xf32, #tpu.memory_space<vmem>>, %arg6: memref<32x32xbf16, #tpu.memory_space<vmem>>, %arg7: memref<1x32xf32, #tpu.memory_space<vmem>>, %arg8: memref<1x32xf32, #tpu.memory_space<vmem>>, %arg9: memref<1x32xf32, #tpu.memory_space<vmem>>, %arg10: memref<32x128xbf16, #tpu.memory_space<vmem>>, %arg11: memref<1x128xf32, #tpu.memory_space<vmem>>, %arg12: memref<128x32xbf16, #tpu.memory_space<vmem>>, %arg13: memref<1x32xf32, #tpu.memory_space<vmem>>, %arg14: memref<1x8x32xf32, #tpu.memory_space<vmem>>, %arg15: memref<8x32xbf16, #tpu.memory_space<vmem>>, %arg16: memref<8x32xf32, #tpu.memory_space<vmem>>) attributes {dimension_semantics = [#tpu.dimension_semantics<parallel>], iteration_bounds = array<i64: 2>, scalar_prefetch = 0 : i64, scratch_operands = 2 : i64, tpu.core_type = #tpu.core_type<tc>, window_params = [{transform_indices = @transform_0, window_bounds = array<i64: 1, 8, 32>}, {pipeline_mode = #tpu.pipeline_mode<synchronous>, transform_indices = @transform_1, window_bounds = array<i64: 1, 32>}, {pipeline_mode = #tpu.pipeline_mode<synchronous>, transform_indices = @transform_2, window_bounds = array<i64: 1, 32>}, {pipeline_mode = #tpu.pipeline_mode<synchronous>, transform_indices = @transform_3, window_bounds = array<i64: 32, 96>}, {pipeline_mode = #tpu.pipeline_mode<synchronous>, transform_indices = @transform_4, window_bounds = array<i64: 1, 96>}, {pipeline_mode = #tpu.pipeline_mode<synchronous>, transform_indices = @transform_5, window_bounds = array<i64: 32, 32>}, {pipeline_mode = #tpu.pipeline_mode<synchronous>, transform_indices = @transform_6, window_bounds = array<i64: 1, 32>}, {pipeline_mode = #tpu.pipeline_mode<synchronous>, transform_indices = @transform_7, window_bounds = array<i64: 1, 32>}, {pipeline_mode = #tpu.pipeline_mode<synchronous>, transform_indices = @transform_8, window_bounds = array<i64: 1, 32>}, {pipeline_mode = #tpu.pipeline_mode<synchronous>, transform_indices = @transform_9, window_bounds = array<i64: 32, 128>}, {pipeline_mode = #tpu.pipeline_mode<synchronous>, transform_indices = @transform_10, window_bounds = array<i64: 1, 128>}, {pipeline_mode = #tpu.pipeline_mode<synchronous>, transform_indices = @transform_11, window_bounds = array<i64: 128, 32>}, {pipeline_mode = #tpu.pipeline_mode<synchronous>, transform_indices = @transform_12, window_bounds = array<i64: 1, 32>}, {transform_indices = @transform_13, window_bounds = array<i64: 1, 8, 32>}]} {
    %c0_i32 = arith.constant 0 : i32
    %c8_i32 = arith.constant 8 : i32
    %0 = arith.muli %c0_i32, %c8_i32 : i32
    %1 = tpu.assume_multiple %0, 8 : i32
    %2 = arith.index_cast %c0_i32 : i32 to index
    %c0 = arith.constant 0 : index
    %c0_0 = arith.constant 0 : index
    %3 = vector.load %arg1[%2, %c0, %c0_0] : memref<1x8x32xf32, #tpu.memory_space<vmem>>, vector<1x8x32xf32>
    %4 = vector.shape_cast %3 : vector<1x8x32xf32> to vector<8x32xf32>
    %c0_1 = arith.constant 0 : index
    %c0_2 = arith.constant 0 : index
    %5 = vector.load %arg2[%c0_1, %c0_2] : memref<1x32xf32, #tpu.memory_space<vmem>>, vector<1x32xf32>
    %c0_3 = arith.constant 0 : index
    %c0_4 = arith.constant 0 : index
    %6 = vector.load %arg3[%c0_3, %c0_4] : memref<1x32xf32, #tpu.memory_space<vmem>>, vector<1x32xf32>
    %cst = arith.constant dense<0.000000e+00> : vector<8xf32>
    %7 = vector.multi_reduction <add>, %4, %cst [1] : vector<8x32xf32> to vector<8xf32>
    %8 = vector.shape_cast %7 : vector<8xf32> to vector<8x1xf32>
    %cst_5 = arith.constant 3.200000e+01 : f32
    %9 = vector.broadcast %cst_5 : f32 to vector<8x1xf32>
    %10 = arith.divf %8, %9 : vector<8x1xf32>
    %11 = vector.broadcast %10 : vector<8x1xf32> to vector<8x32xf32>
    %12 = arith.subf %4, %11 : vector<8x32xf32>
    %13 = arith.mulf %12, %12 : vector<8x32xf32>
    %cst_6 = arith.constant dense<0.000000e+00> : vector<8xf32>
    %14 = vector.multi_reduction <add>, %13, %cst_6 [1] : vector<8x32xf32> to vector<8xf32>
    %15 = vector.shape_cast %14 : vector<8xf32> to vector<8x1xf32>
    %cst_7 = arith.constant 3.200000e+01 : f32
    %16 = vector.broadcast %cst_7 : f32 to vector<8x1xf32>
    %17 = arith.divf %15, %16 : vector<8x1xf32>
    %18 = vector.broadcast %10 : vector<8x1xf32> to vector<8x32xf32>
    %19 = arith.subf %4, %18 : vector<8x32xf32>
    %cst_8 = arith.constant 9.99999974E-6 : f32
    %20 = vector.broadcast %cst_8 : f32 to vector<8x1xf32>
    %21 = arith.addf %17, %20 : vector<8x1xf32>
    %22 = math.rsqrt %21 : vector<8x1xf32>
    %23 = vector.broadcast %22 : vector<8x1xf32> to vector<8x32xf32>
    %24 = arith.mulf %19, %23 : vector<8x32xf32>
    %25 = vector.broadcast %5 : vector<1x32xf32> to vector<8x32xf32>
    %26 = arith.mulf %24, %25 : vector<8x32xf32>
    %27 = vector.broadcast %6 : vector<1x32xf32> to vector<8x32xf32>
    %28 = arith.addf %26, %27 : vector<8x32xf32>
    %29 = arith.truncf %28 : vector<8x32xf32> to vector<8x32xbf16>
    %c0_9 = arith.constant 0 : index
    %c0_10 = arith.constant 0 : index
    %30 = vector.load %arg4[%c0_9, %c0_10] : memref<32x96xbf16, #tpu.memory_space<vmem>>, vector<32x96xbf16>
    %cst_11 = arith.constant dense<0.000000e+00> : vector<8x96xf32>
    %31 = tpu.matmul %29, %30, %cst_11 {dimension_numbers = #tpu.dot_dimension_numbers<[1], [0], [0], [1], [0, 0, 1, 1], [], []>} : vector<8x32xbf16>, vector<32x96xbf16>, vector<8x96xf32> -> vector<8x96xf32>
    %c0_12 = arith.constant 0 : index
    %c0_13 = arith.constant 0 : index
    %32 = vector.load %arg5[%c0_12, %c0_13] : memref<1x96xf32, #tpu.memory_space<vmem>>, vector<1x96xf32>
    %33 = vector.broadcast %32 : vector<1x96xf32> to vector<8x96xf32>
    %34 = arith.addf %31, %33 : vector<8x96xf32>
    %35 = arith.truncf %34 : vector<8x96xf32> to vector<8x96xbf16>
    %36 = vector.extract_strided_slice %35 {offsets = [0, 0], sizes = [8, 16], strides = [1, 1]} : vector<8x96xbf16> to vector<8x16xbf16>
    %37 = vector.extract_strided_slice %35 {offsets = [0, 32], sizes = [8, 16], strides = [1, 1]} : vector<8x96xbf16> to vector<8x16xbf16>
    %38 = vector.extract_strided_slice %35 {offsets = [0, 64], sizes = [8, 16], strides = [1, 1]} : vector<8x96xbf16> to vector<8x16xbf16>
    %39 = vector.extract_strided_slice %36 {offsets = [0, 0], sizes = [8, 8], strides = [1, 1]} : vector<8x16xbf16> to vector<8x8xbf16>
    %40 = vector.extract_strided_slice %37 {offsets = [0, 0], sizes = [8, 8], strides = [1, 1]} : vector<8x16xbf16> to vector<8x8xbf16>
    %41 = vector.extract_strided_slice %38 {offsets = [0, 0], sizes = [8, 8], strides = [1, 1]} : vector<8x16xbf16> to vector<8x8xbf16>
    %cst_14 = arith.constant dense<0.000000e+00> : vector<8x8xf32>
    %42 = tpu.matmul %39, %40, %cst_14 {dimension_numbers = #tpu.dot_dimension_numbers<[1], [1], [0], [0], [0, 0, 1, 0], [], []>} : vector<8x8xbf16>, vector<8x8xbf16>, vector<8x8xf32> -> vector<8x8xf32>
    %cst_15 = arith.constant dense<0xFF800000> : vector<8xf32>
    %43 = vector.multi_reduction <maximumf>, %42, %cst_15 [1] : vector<8x8xf32> to vector<8xf32>
    %44 = vector.shape_cast %43 : vector<8xf32> to vector<8x1xf32>
    %45 = vector.broadcast %44 : vector<8x1xf32> to vector<8x8xf32>
    %46 = arith.subf %42, %45 : vector<8x8xf32>
    %47 = math.exp %46 : vector<8x8xf32>
    %cst_16 = arith.constant dense<0.000000e+00> : vector<8xf32>
    %48 = vector.multi_reduction <add>, %47, %cst_16 [1] : vector<8x8xf32> to vector<8xf32>
    %49 = vector.shape_cast %48 : vector<8xf32> to vector<8x1xf32>
    %50 = tpu.reciprocal %49 {approx = true} : vector<8x1xf32> -> vector<8x1xf32>
    %51 = vector.broadcast %50 : vector<8x1xf32> to vector<8x8xf32>
    %52 = arith.mulf %47, %51 : vector<8x8xf32>
    %53 = arith.truncf %52 : vector<8x8xf32> to vector<8x8xbf16>
    %cst_17 = arith.constant dense<0.000000e+00> : vector<8x8xf32>
    %54 = tpu.matmul %53, %41, %cst_17 {dimension_numbers = #tpu.dot_dimension_numbers<[1], [0], [0], [1], [0, 0, 1, 1], [], []>} : vector<8x8xbf16>, vector<8x8xbf16>, vector<8x8xf32> -> vector<8x8xf32>
    %55 = vector.extract_strided_slice %36 {offsets = [0, 8], sizes = [8, 8], strides = [1, 1]} : vector<8x16xbf16> to vector<8x8xbf16>
    %56 = vector.extract_strided_slice %37 {offsets = [0, 8], sizes = [8, 8], strides = [1, 1]} : vector<8x16xbf16> to vector<8x8xbf16>
    %57 = vector.extract_strided_slice %38 {offsets = [0, 8], sizes = [8, 8], strides = [1, 1]} : vector<8x16xbf16> to vector<8x8xbf16>
    %cst_18 = arith.constant dense<0.000000e+00> : vector<8x8xf32>
    %58 = tpu.matmul %55, %56, %cst_18 {dimension_numbers = #tpu.dot_dimension_numbers<[1], [1], [0], [0], [0, 0, 1, 0], [], []>} : vector<8x8xbf16>, vector<8x8xbf16>, vector<8x8xf32> -> vector<8x8xf32>
    %cst_19 = arith.constant dense<0xFF800000> : vector<8xf32>
    %59 = vector.multi_reduction <maximumf>, %58, %cst_19 [1] : vector<8x8xf32> to vector<8xf32>
    %60 = vector.shape_cast %59 : vector<8xf32> to vector<8x1xf32>
    %61 = vector.broadcast %60 : vector<8x1xf32> to vector<8x8xf32>
    %62 = arith.subf %58, %61 : vector<8x8xf32>
    %63 = math.exp %62 : vector<8x8xf32>
    %cst_20 = arith.constant dense<0.000000e+00> : vector<8xf32>
    %64 = vector.multi_reduction <add>, %63, %cst_20 [1] : vector<8x8xf32> to vector<8xf32>
    %65 = vector.shape_cast %64 : vector<8xf32> to vector<8x1xf32>
    %66 = tpu.reciprocal %65 {approx = true} : vector<8x1xf32> -> vector<8x1xf32>
    %67 = vector.broadcast %66 : vector<8x1xf32> to vector<8x8xf32>
    %68 = arith.mulf %63, %67 : vector<8x8xf32>
    %69 = arith.truncf %68 : vector<8x8xf32> to vector<8x8xbf16>
    %cst_21 = arith.constant dense<0.000000e+00> : vector<8x8xf32>
    %70 = tpu.matmul %69, %57, %cst_21 {dimension_numbers = #tpu.dot_dimension_numbers<[1], [0], [0], [1], [0, 0, 1, 1], [], []>} : vector<8x8xbf16>, vector<8x8xbf16>, vector<8x8xf32> -> vector<8x8xf32>
    %71 = tpu.concatenate %54, %70 in 1 : vector<8x8xf32>, vector<8x8xf32> -> vector<8x16xf32>
    %72 = arith.truncf %71 : vector<8x16xf32> to vector<8x16xbf16>
    %73 = arith.index_cast %1 : i32 to index
    %c0_22 = arith.constant 0 : index
    %74 = vector.load %arg15[%73, %c0_22] : memref<8x32xbf16, #tpu.memory_space<vmem>>, vector<8x16xbf16>
    tpu.vector_store %arg15[%73, %c0_22], %72 {strides = array<i32>} : memref<8x32xbf16, #tpu.memory_space<vmem>>, vector<8x16xbf16>,
    %75 = vector.extract_strided_slice %35 {offsets = [0, 16], sizes = [8, 16], strides = [1, 1]} : vector<8x96xbf16> to vector<8x16xbf16>
    %76 = vector.extract_strided_slice %35 {offsets = [0, 48], sizes = [8, 16], strides = [1, 1]} : vector<8x96xbf16> to vector<8x16xbf16>
    %77 = vector.extract_strided_slice %35 {offsets = [0, 80], sizes = [8, 16], strides = [1, 1]} : vector<8x96xbf16> to vector<8x16xbf16>
    %78 = vector.extract_strided_slice %75 {offsets = [0, 0], sizes = [8, 8], strides = [1, 1]} : vector<8x16xbf16> to vector<8x8xbf16>
    %79 = vector.extract_strided_slice %76 {offsets = [0, 0], sizes = [8, 8], strides = [1, 1]} : vector<8x16xbf16> to vector<8x8xbf16>
    %80 = vector.extract_strided_slice %77 {offsets = [0, 0], sizes = [8, 8], strides = [1, 1]} : vector<8x16xbf16> to vector<8x8xbf16>
    %cst_23 = arith.constant dense<0.000000e+00> : vector<8x8xf32>
    %81 = tpu.matmul %78, %79, %cst_23 {dimension_numbers = #tpu.dot_dimension_numbers<[1], [1], [0], [0], [0, 0, 1, 0], [], []>} : vector<8x8xbf16>, vector<8x8xbf16>, vector<8x8xf32> -> vector<8x8xf32>
    %cst_24 = arith.constant dense<0xFF800000> : vector<8xf32>
    %82 = vector.multi_reduction <maximumf>, %81, %cst_24 [1] : vector<8x8xf32> to vector<8xf32>
    %83 = vector.shape_cast %82 : vector<8xf32> to vector<8x1xf32>
    %84 = vector.broadcast %83 : vector<8x1xf32> to vector<8x8xf32>
    %85 = arith.subf %81, %84 : vector<8x8xf32>
    %86 = math.exp %85 : vector<8x8xf32>
    %cst_25 = arith.constant dense<0.000000e+00> : vector<8xf32>
    %87 = vector.multi_reduction <add>, %86, %cst_25 [1] : vector<8x8xf32> to vector<8xf32>
    %88 = vector.shape_cast %87 : vector<8xf32> to vector<8x1xf32>
    %89 = tpu.reciprocal %88 {approx = true} : vector<8x1xf32> -> vector<8x1xf32>
    %90 = vector.broadcast %89 : vector<8x1xf32> to vector<8x8xf32>
    %91 = arith.mulf %86, %90 : vector<8x8xf32>
    %92 = arith.truncf %91 : vector<8x8xf32> to vector<8x8xbf16>
    %cst_26 = arith.constant dense<0.000000e+00> : vector<8x8xf32>
    %93 = tpu.matmul %92, %80, %cst_26 {dimension_numbers = #tpu.dot_dimension_numbers<[1], [0], [0], [1], [0, 0, 1, 1], [], []>} : vector<8x8xbf16>, vector<8x8xbf16>, vector<8x8xf32> -> vector<8x8xf32>
    %94 = vector.extract_strided_slice %75 {offsets = [0, 8], sizes = [8, 8], strides = [1, 1]} : vector<8x16xbf16> to vector<8x8xbf16>
    %95 = vector.extract_strided_slice %76 {offsets = [0, 8], sizes = [8, 8], strides = [1, 1]} : vector<8x16xbf16> to vector<8x8xbf16>
    %96 = vector.extract_strided_slice %77 {offsets = [0, 8], sizes = [8, 8], strides = [1, 1]} : vector<8x16xbf16> to vector<8x8xbf16>
    %cst_27 = arith.constant dense<0.000000e+00> : vector<8x8xf32>
    %97 = tpu.matmul %94, %95, %cst_27 {dimension_numbers = #tpu.dot_dimension_numbers<[1], [1], [0], [0], [0, 0, 1, 0], [], []>} : vector<8x8xbf16>, vector<8x8xbf16>, vector<8x8xf32> -> vector<8x8xf32>
    %cst_28 = arith.constant dense<0xFF800000> : vector<8xf32>
    %98 = vector.multi_reduction <maximumf>, %97, %cst_28 [1] : vector<8x8xf32> to vector<8xf32>
    %99 = vector.shape_cast %98 : vector<8xf32> to vector<8x1xf32>
    %100 = vector.broadcast %99 : vector<8x1xf32> to vector<8x8xf32>
    %101 = arith.subf %97, %100 : vector<8x8xf32>
    %102 = math.exp %101 : vector<8x8xf32>
    %cst_29 = arith.constant dense<0.000000e+00> : vector<8xf32>
    %103 = vector.multi_reduction <add>, %102, %cst_29 [1] : vector<8x8xf32> to vector<8xf32>
    %104 = vector.shape_cast %103 : vector<8xf32> to vector<8x1xf32>
    %105 = tpu.reciprocal %104 {approx = true} : vector<8x1xf32> -> vector<8x1xf32>
    %106 = vector.broadcast %105 : vector<8x1xf32> to vector<8x8xf32>
    %107 = arith.mulf %102, %106 : vector<8x8xf32>
    %108 = arith.truncf %107 : vector<8x8xf32> to vector<8x8xbf16>
    %cst_30 = arith.constant dense<0.000000e+00> : vector<8x8xf32>
    %109 = tpu.matmul %108, %96, %cst_30 {dimension_numbers = #tpu.dot_dimension_numbers<[1], [0], [0], [1], [0, 0, 1, 1], [], []>} : vector<8x8xbf16>, vector<8x8xbf16>, vector<8x8xf32> -> vector<8x8xf32>
    %110 = tpu.concatenate %93, %109 in 1 : vector<8x8xf32>, vector<8x8xf32> -> vector<8x16xf32>
    %111 = arith.truncf %110 : vector<8x16xf32> to vector<8x16xbf16>
    %112 = arith.index_cast %1 : i32 to index
    %c16 = arith.constant 16 : index
    %113 = vector.load %arg15[%112, %c16] : memref<8x32xbf16, #tpu.memory_space<vmem>>, vector<8x16xbf16>
    tpu.vector_store %arg15[%112, %c16], %111 {strides = array<i32>} : memref<8x32xbf16, #tpu.memory_space<vmem>>, vector<8x16xbf16>,
    %c1_i32 = arith.constant 1 : i32
    %c0_31 = arith.constant 0 : index
    %c0_32 = arith.constant 0 : index
    %114 = vector.load %arg15[%c0_31, %c0_32] : memref<8x32xbf16, #tpu.memory_space<vmem>>, vector<8x32xbf16>
    %c0_33 = arith.constant 0 : index
    %c0_34 = arith.constant 0 : index
    %115 = vector.load %arg6[%c0_33, %c0_34] : memref<32x32xbf16, #tpu.memory_space<vmem>>, vector<32x32xbf16>
    %cst_35 = arith.constant dense<0.000000e+00> : vector<8x32xf32>
    %116 = tpu.matmul %114, %115, %cst_35 {dimension_numbers = #tpu.dot_dimension_numbers<[1], [0], [0], [1], [0, 0, 1, 1], [], []>} : vector<8x32xbf16>, vector<32x32xbf16>, vector<8x32xf32> -> vector<8x32xf32>
    %c0_36 = arith.constant 0 : index
    %c0_37 = arith.constant 0 : index
    %117 = vector.load %arg7[%c0_36, %c0_37] : memref<1x32xf32, #tpu.memory_space<vmem>>, vector<1x32xf32>
    %118 = vector.broadcast %117 : vector<1x32xf32> to vector<8x32xf32>
    %119 = arith.addf %116, %118 : vector<8x32xf32>
    %c0_38 = arith.constant 0 : index
    %c0_39 = arith.constant 0 : index
    %c0_40 = arith.constant 0 : index
    %120 = vector.load %arg1[%c0_38, %c0_39, %c0_40] : memref<1x8x32xf32, #tpu.memory_space<vmem>>, vector<1x8x32xf32>
    %121 = vector.shape_cast %120 : vector<1x8x32xf32> to vector<8x32xf32>
    %122 = arith.addf %121, %119 : vector<8x32xf32>
    %c0_41 = arith.constant 0 : index
    %c0_42 = arith.constant 0 : index
    %123 = vector.load %arg16[%c0_41, %c0_42] : memref<8x32xf32, #tpu.memory_space<vmem>>, vector<8x32xf32>
    tpu.vector_store %arg16[%c0_41, %c0_42], %122 {strides = array<i32>} : memref<8x32xf32, #tpu.memory_space<vmem>>, vector<8x32xf32>,
    %c0_i32_43 = arith.constant 0 : i32
    %c8_i32_44 = arith.constant 8 : i32
    %124 = arith.muli %c0_i32_43, %c8_i32_44 : i32
    %125 = tpu.assume_multiple %124, 8 : i32
    %126 = arith.index_cast %125 : i32 to index
    %c0_45 = arith.constant 0 : index
    %127 = vector.load %arg16[%126, %c0_45] : memref<8x32xf32, #tpu.memory_space<vmem>>, vector<8x32xf32>
    %c0_46 = arith.constant 0 : index
    %c0_47 = arith.constant 0 : index
    %128 = vector.load %arg8[%c0_46, %c0_47] : memref<1x32xf32, #tpu.memory_space<vmem>>, vector<1x32xf32>
    %c0_48 = arith.constant 0 : index
    %c0_49 = arith.constant 0 : index
    %129 = vector.load %arg9[%c0_48, %c0_49] : memref<1x32xf32, #tpu.memory_space<vmem>>, vector<1x32xf32>
    %cst_50 = arith.constant dense<0.000000e+00> : vector<8xf32>
    %130 = vector.multi_reduction <add>, %127, %cst_50 [1] : vector<8x32xf32> to vector<8xf32>
    %131 = vector.shape_cast %130 : vector<8xf32> to vector<8x1xf32>
    %cst_51 = arith.constant 3.200000e+01 : f32
    %132 = vector.broadcast %cst_51 : f32 to vector<8x1xf32>
    %133 = arith.divf %131, %132 : vector<8x1xf32>
    %134 = vector.broadcast %133 : vector<8x1xf32> to vector<8x32xf32>
    %135 = arith.subf %127, %134 : vector<8x32xf32>
    %136 = arith.mulf %135, %135 : vector<8x32xf32>
    %cst_52 = arith.constant dense<0.000000e+00> : vector<8xf32>
    %137 = vector.multi_reduction <add>, %136, %cst_52 [1] : vector<8x32xf32> to vector<8xf32>
    %138 = vector.shape_cast %137 : vector<8xf32> to vector<8x1xf32>
    %cst_53 = arith.constant 3.200000e+01 : f32
    %139 = vector.broadcast %cst_53 : f32 to vector<8x1xf32>
    %140 = arith.divf %138, %139 : vector<8x1xf32>
    %141 = vector.broadcast %133 : vector<8x1xf32> to vector<8x32xf32>
    %142 = arith.subf %127, %141 : vector<8x32xf32>
    %cst_54 = arith.constant 9.99999974E-6 : f32
    %143 = vector.broadcast %cst_54 : f32 to vector<8x1xf32>
    %144 = arith.addf %140, %143 : vector<8x1xf32>
    %145 = math.rsqrt %144 : vector<8x1xf32>
    %146 = vector.broadcast %145 : vector<8x1xf32> to vector<8x32xf32>
    %147 = arith.mulf %142, %146 : vector<8x32xf32>
    %148 = vector.broadcast %128 : vector<1x32xf32> to vector<8x32xf32>
    %149 = arith.mulf %147, %148 : vector<8x32xf32>
    %150 = vector.broadcast %129 : vector<1x32xf32> to vector<8x32xf32>
    %151 = arith.addf %149, %150 : vector<8x32xf32>
    %152 = arith.truncf %151 : vector<8x32xf32> to vector<8x32xbf16>
    %c0_55 = arith.constant 0 : index
    %c0_56 = arith.constant 0 : index
    %153 = vector.load %arg10[%c0_55, %c0_56] : memref<32x128xbf16, #tpu.memory_space<vmem>>, vector<32x128xbf16>
    %cst_57 = arith.constant dense<0.000000e+00> : vector<8x128xf32>
    %154 = tpu.matmul %152, %153, %cst_57 {dimension_numbers = #tpu.dot_dimension_numbers<[1], [0], [0], [1], [0, 0, 1, 1], [], []>} : vector<8x32xbf16>, vector<32x128xbf16>, vector<8x128xf32> -> vector<8x128xf32>
    %c0_58 = arith.constant 0 : index
    %c0_59 = arith.constant 0 : index
    %155 = vector.load %arg11[%c0_58, %c0_59] : memref<1x128xf32, #tpu.memory_space<vmem>>, vector<1x128xf32>
    %156 = vector.broadcast %155 : vector<1x128xf32> to vector<8x128xf32>
    %157 = arith.addf %154, %156 : vector<8x128xf32>
    %cst_60 = arith.constant 1.702000e+00 : f32
    %158 = vector.broadcast %cst_60 : f32 to vector<8x128xf32>
    %159 = arith.mulf %158, %157 : vector<8x128xf32>
    %160 = arith.negf %159 : vector<8x128xf32>
    %161 = math.exp %160 : vector<8x128xf32>
    %cst_61 = arith.constant 1.000000e+00 : f32
    %162 = vector.broadcast %cst_61 : f32 to vector<8x128xf32>
    %163 = arith.addf %162, %161 : vector<8x128xf32>
    %164 = arith.divf %162, %163 : vector<8x128xf32>
    %165 = arith.mulf %157, %164 : vector<8x128xf32>
    %166 = arith.truncf %165 : vector<8x128xf32> to vector<8x128xbf16>
    %c0_62 = arith.constant 0 : index
    %c0_63 = arith.constant 0 : index
    %167 = vector.load %arg12[%c0_62, %c0_63] : memref<128x32xbf16, #tpu.memory_space<vmem>>, vector<128x32xbf16>
    %cst_64 = arith.constant dense<0.000000e+00> : vector<8x32xf32>
    %168 = tpu.matmul %166, %167, %cst_64 {dimension_numbers = #tpu.dot_dimension_numbers<[1], [0], [0], [1], [0, 0, 1, 1], [], []>} : vector<8x128xbf16>, vector<128x32xbf16>, vector<8x32xf32> -> vector<8x32xf32>
    %c0_65 = arith.constant 0 : index
    %c0_66 = arith.constant 0 : index
    %169 = vector.load %arg13[%c0_65, %c0_66] : memref<1x32xf32, #tpu.memory_space<vmem>>, vector<1x32xf32>
    %170 = vector.broadcast %169 : vector<1x32xf32> to vector<8x32xf32>
    %171 = arith.addf %168, %170 : vector<8x32xf32>
    %172 = arith.addf %127, %171 : vector<8x32xf32>
    %173 = arith.index_cast %c0_i32_43 : i32 to index
    %c0_67 = arith.constant 0 : index
    %c0_68 = arith.constant 0 : index
    %174 = vector.load %arg14[%173, %c0_67, %c0_68] : memref<1x8x32xf32, #tpu.memory_space<vmem>>, vector<1x8x32xf32>
    %175 = vector.shape_cast %174 : vector<1x8x32xf32> to vector<8x32xf32>
    %176 = vector.shape_cast %172 : vector<8x32xf32> to vector<1x8x32xf32>
    tpu.vector_store %arg14[%173, %c0_67, %c0_68], %176 {strides = array<i32>} : memref<1x8x32xf32, #tpu.memory_space<vmem>>, vector<1x8x32xf32>,
    %c1_i32_69 = arith.constant 1 : i32
    return
  }
  func.func @transform_0(%arg0: i32) -> (i32, i32, i32) {
    %c0_i32 = arith.constant 0 : i32
    %c0_i32_0 = arith.constant 0 : i32
    %c0_i32_1 = arith.constant 0 : i32
    return %arg0, %c0_i32, %c0_i32_0 : i32, i32, i32
  }
  func.func @transform_1(%arg0: i32) -> (i32, i32) {
    %c0_i32 = arith.constant 0 : i32
    %c0_i32_0 = arith.constant 0 : i32
    %c0_i32_1 = arith.constant 0 : i32
    return %c0_i32, %c0_i32_0 : i32, i32
  }
  func.func @transform_2(%arg0: i32) -> (i32, i32) {
    %c0_i32 = arith.constant 0 : i32
    %c0_i32_0 = arith.constant 0 : i32
    %c0_i32_1 = arith.constant 0 : i32
    return %c0_i32, %c0_i32_0 : i32, i32
  }
  func.func @transform_3(%arg0: i32) -> (i32, i32) {
    %c0_i32 = arith.constant 0 : i32
    %c0_i32_0 = arith.constant 0 : i32
    %c0_i32_1 = arith.constant 0 : i32
    return %c0_i32, %c0_i32_0 : i32, i32
  }
  func.func @transform_4(%arg0: i32) -> (i32, i32) {
    %c0_i32 = arith.constant 0 : i32
    %c0_i32_0 = arith.constant 0 : i32
    %c0_i32_1 = arith.constant 0 : i32
    return %c0_i32, %c0_i32_0 : i32, i32
  }
  func.func @transform_5(%arg0: i32) -> (i32, i32) {
    %c0_i32 = arith.constant 0 : i32
    %c0_i32_0 = arith.constant 0 : i32
    %c0_i32_1 = arith.constant 0 : i32
    return %c0_i32, %c0_i32_0 : i32, i32
  }
  func.func @transform_6(%arg0: i32) -> (i32, i32) {
    %c0_i32 = arith.constant 0 : i32
    %c0_i32_0 = arith.constant 0 : i32
    %c0_i32_1 = arith.constant 0 : i32
    return %c0_i32, %c0_i32_0 : i32, i32
  }
  func.func @transform_7(%arg0: i32) -> (i32, i32) {
    %c0_i32 = arith.constant 0 : i32
    %c0_i32_0 = arith.constant 0 : i32
    %c0_i32_1 = arith.constant 0 : i32
    return %c0_i32, %c0_i32_0 : i32, i32
  }
  func.func @transform_8(%arg0: i32) -> (i32, i32) {
    %c0_i32 = arith.constant 0 : i32
    %c0_i32_0 = arith.constant 0 : i32
    %c0_i32_1 = arith.constant 0 : i32
    return %c0_i32, %c0_i32_0 : i32, i32
  }
  func.func @transform_9(%arg0: i32) -> (i32, i32) {
    %c0_i32 = arith.constant 0 : i32
    %c0_i32_0 = arith.constant 0 : i32
    %c0_i32_1 = arith.constant 0 : i32
    return %c0_i32, %c0_i32_0 : i32, i32
  }
  func.func @transform_10(%arg0: i32) -> (i32, i32) {
    %c0_i32 = arith.constant 0 : i32
    %c0_i32_0 = arith.constant 0 : i32
    %c0_i32_1 = arith.constant 0 : i32
    return %c0_i32, %c0_i32_0 : i32, i32
  }
  func.func @transform_11(%arg0: i32) -> (i32, i32) {
    %c0_i32 = arith.constant 0 : i32
    %c0_i32_0 = arith.constant 0 : i32
    %c0_i32_1 = arith.constant 0 : i32
    return %c0_i32, %c0_i32_0 : i32, i32
  }
  func.func @transform_12(%arg0: i32) -> (i32, i32) {
    %c0_i32 = arith.constant 0 : i32
    %c0_i32_0 = arith.constant 0 : i32
    %c0_i32_1 = arith.constant 0 : i32
    return %c0_i32, %c0_i32_0 : i32, i32
  }
  func.func @transform_13(%arg0: i32) -> (i32, i32, i32) {
    %c0_i32 = arith.constant 0 : i32
    %c0_i32_0 = arith.constant 0 : i32
    %c0_i32_1 = arith.constant 0 : i32
    return %arg0, %c0_i32, %c0_i32_0 : i32, i32, i32
  }
}

</mosaic_0001>

<llo_original>
// kernel: tpu_custom_call.1
$region0: #{tpu_custom_call.1}
  #allocation0 [shape = 'u32[]', space=smem, size = 0x4, offset = 0x4, fixed_abs, tag = 'smem constant byte address 0x4 - core index']
  #allocation1 [shape = 'u32[144,128]{1,0:T(1,128)}', space=vmem, size = 0x12000, scoped, tag = 'internal scratch']
  #allocation2 [shape = 'bf16[8,32]{1,0:T(8,128)(2,1)}', space=vmem, size = 0x800, scoped, tag = 'scratch operand']
  #allocation3 [shape = 'f32[8,32]{1,0:T(8,128)}', space=vmem, size = 0x1000, scoped, tag = 'scratch operand']
  %s0 = inlined_call_operand.vmem [shape: f32[2,8,32], index: 0, kind: input, shape index: {}]
  %s1 = inlined_call_operand.vmem [shape: f32[1,32], index: 1, kind: input, shape index: {}]
  %s2 = inlined_call_operand.vmem [shape: f32[1,32], index: 2, kind: input, shape index: {}]
  %s3 = inlined_call_operand.vmem [shape: bf16[32,96], index: 3, kind: input, shape index: {}]
  %s4 = inlined_call_operand.vmem [shape: f32[1,96], index: 4, kind: input, shape index: {}]
  %s5 = inlined_call_operand.vmem [shape: bf16[32,32], index: 5, kind: input, shape index: {}]
  %s6 = inlined_call_operand.vmem [shape: f32[1,32], index: 6, kind: input, shape index: {}]
  %s7 = inlined_call_operand.vmem [shape: f32[1,32], index: 7, kind: input, shape index: {}]
  %s8 = inlined_call_operand.vmem [shape: f32[1,32], index: 8, kind: input, shape index: {}]
  %s9 = inlined_call_operand.vmem [shape: bf16[32,128], index: 9, kind: input, shape index: {}]
  %s10 = inlined_call_operand.vmem [shape: f32[1,128], index: 10, kind: input, shape index: {}]
  %s11 = inlined_call_operand.vmem [shape: bf16[128,32], index: 11, kind: input, shape index: {}]
  %s12 = inlined_call_operand.vmem [shape: f32[1,32], index: 12, kind: input, shape index: {}]
  %s13 = inlined_call_operand.hbm [shape: f32[2,8,32], index: 13, kind: output, shape index: {}]
  %s14 = sld [smem:[#allocation0]]
  $region85: #{tpu_custom_call.1} parent=0
    _
  %s16 = ssub.s32 1, %s14
  %s17 = scalar_select 0, %s16, %s14
  $region1: #{tpu_custom_call.1} parent=0
    #allocation4 [shape = 'u8[8192]{0}', space=vmem, size = 0x2000, scoped, tag = 'output window, operand 0']
    #allocation5 [shape = 's32[2]{0}', space=sflag, size = 0x8, scoped, tag = 'scoped memory for tpu_custom_call.1']
    %18 = vsyncpa [#allocation5], 0
    %s19 = scalar_lea.sflag [#allocation5], 1
    %20 = vsyncpa %s19, 0
    loop: start=0, step=1, limit=4
    $region2: #{tpu_custom_call.1} parent=1 // loop_pre_header
      _
    $region3: #{tpu_custom_call.1} parent=1 // loop_header
      %s22 = sphi 0, %s26
      %p23 = scmp.ge.s32.totalorder %s22, 4
      %s32 = sphi 0, %s34
      %s35 = sphi 0, %s32
      %s36 = sphi 0, %s35
      %s52 = sphi 0, %s36
      %s56 = sphi 0, %s56
      %s58 = sphi 0, %s56
      %s59 = sphi 0, %s58
      %s73 = sphi 0, %s59
      %s77 = sphi 0, %s77
      %s79 = sphi 0, %s77
      %s80 = sphi 0, %s79
      %s94 = sphi 0, %s80
      %s98 = sphi 0, %s98
      %s100 = sphi 0, %s98
      %s101 = sphi 0, %s100
      %s115 = sphi 0, %s101
      %s119 = sphi 0, %s119
      %s121 = sphi 0, %s119
      %s122 = sphi 0, %s121
      %s136 = sphi 0, %s122
      %s140 = sphi 0, %s140
      %s142 = sphi 0, %s140
      %s143 = sphi 0, %s142
      %s157 = sphi 0, %s143
      %s161 = sphi 0, %s161
      %s163 = sphi 0, %s161
      %s164 = sphi 0, %s163
      %s178 = sphi 0, %s164
      %s182 = sphi 0, %s182
      %s184 = sphi 0, %s182
      %s185 = sphi 0, %s184
      %s199 = sphi 0, %s185
      %s203 = sphi 0, %s203
      %s205 = sphi 0, %s203
      %s206 = sphi 0, %s205
      %s220 = sphi 0, %s206
      %s224 = sphi 0, %s224
      %s226 = sphi 0, %s224
      %s227 = sphi 0, %s226
      %s241 = sphi 0, %s227
      %s245 = sphi 0, %s245
      %s247 = sphi 0, %s245
      %s248 = sphi 0, %s247
      %s262 = sphi 0, %s248
      %s266 = sphi 0, %s266
      %s268 = sphi 0, %s266
      %s269 = sphi 0, %s268
      %s283 = sphi 0, %s269
      %s287 = sphi 0, %s287
      %s289 = sphi 0, %s287
      %s290 = sphi 0, %s289
      %s304 = sphi 0, %s290
      %s310 = sphi 0, %s312
      %s313 = sphi 0, %s310
      %s314 = sphi 0, %s313
      %s330 = sphi 0, %s314
    $region4: #{tpu_custom_call.1} parent=1 // loop_header_branch
      %25 = sbr.rel (%p23) target = $region8
    $region5: #{tpu_custom_call.1} parent=1 // loop_body
      %s27 = ssub.s32 %s22, 1
      %s28 = ssub.s32 %s22, 2
      %s29 = sadd.s32 %s22, 1
      %s30 = ssub.s32 %s22, %s29
      %p31 = scmp.eq.s32.totalorder %s30, 0
      %s33 = sadd.s32 %s32, 1
      %s34 = scalar_select %p31, %s32, %s33
      %p37 = pneg %p31
      %p38 = scmp.eq.s32.totalorder %s22, 1
      %p39 = por %p37, %p38
      %p40 = scmp.ne.s32.totalorder %s32, %s35
      %p41 = scmp.eq.s32.totalorder %s22, 0
      %p42 = por %p40, %p41
      %p43 = scmp.ne.s32.totalorder %s32, %s35
      %p44 = scmp.eq.s32.totalorder %s27, 1
      %p45 = por %p43, %p44
      %p46 = scmp.ne.s32.totalorder %s35, %s36
      %p47 = scmp.eq.s32.totalorder %s27, 0
      %p48 = por %p46, %p47
      %p49 = scmp.ne.s32.totalorder %s35, %s36
      %p50 = scmp.eq.s32.totalorder %s28, 1
      %p51 = por %p49, %p50
      %p53 = scmp.ne.s32.totalorder %s36, %s52
      %p54 = scmp.eq.s32.totalorder %s28, 0
      %p55 = por %p53, %p54
      %s57 = sadd.s32 %s56, 1
      %p60 = scmp.eq.s32.totalorder %s22, 1
      %p61 = scmp.ne.s32.totalorder %s56, %s58
      %p62 = scmp.eq.s32.totalorder %s22, 0
      %p63 = por %p61, %p62
      %p64 = scmp.ne.s32.totalorder %s56, %s58
      %p65 = scmp.eq.s32.totalorder %s27, 1
      %p66 = por %p64, %p65
      %p67 = scmp.ne.s32.totalorder %s58, %s59
      %p68 = scmp.eq.s32.totalorder %s27, 0
      %p69 = por %p67, %p68
      %p70 = scmp.ne.s32.totalorder %s58, %s59
      %p71 = scmp.eq.s32.totalorder %s28, 1
      %p72 = por %p70, %p71
      %p74 = scmp.ne.s32.totalorder %s59, %s73
      %p75 = scmp.eq.s32.totalorder %s28, 0
      %p76 = por %p74, %p75
      %s78 = sadd.s32 %s77, 1
      %p81 = scmp.eq.s32.totalorder %s22, 1
      %p82 = scmp.ne.s32.totalorder %s77, %s79
      %p83 = scmp.eq.s32.totalorder %s22, 0
      %p84 = por %p82, %p83
      %p85 = scmp.ne.s32.totalorder %s77, %s79
      %p86 = scmp.eq.s32.totalorder %s27, 1
      %p87 = por %p85, %p86
      %p88 = scmp.ne.s32.totalorder %s79, %s80
      %p89 = scmp.eq.s32.totalorder %s27, 0
      %p90 = por %p88, %p89
      %p91 = scmp.ne.s32.totalorder %s79, %s80
      %p92 = scmp.eq.s32.totalorder %s28, 1
      %p93 = por %p91, %p92
      %p95 = scmp.ne.s32.totalorder %s80, %s94
      %p96 = scmp.eq.s32.totalorder %s28, 0
      %p97 = por %p95, %p96
      %s99 = sadd.s32 %s98, 1
      %p102 = scmp.eq.s32.totalorder %s22, 1
      %p103 = scmp.ne.s32.totalorder %s98, %s100
      %p104 = scmp.eq.s32.totalorder %s22, 0
      %p105 = por %p103, %p104
      %p106 = scmp.ne.s32.totalorder %s98, %s100
      %p107 = scmp.eq.s32.totalorder %s27, 1
      %p108 = por %p106, %p107
      %p109 = scmp.ne.s32.totalorder %s100, %s101
      %p110 = scmp.eq.s32.totalorder %s27, 0
      %p111 = por %p109, %p110
      %p112 = scmp.ne.s32.totalorder %s100, %s101
      %p113 = scmp.eq.s32.totalorder %s28, 1
      %p114 = por %p112, %p113
      %p116 = scmp.ne.s32.totalorder %s101, %s115
      %p117 = scmp.eq.s32.totalorder %s28, 0
      %p118 = por %p116, %p117
      %s120 = sadd.s32 %s119, 1
      %p123 = scmp.eq.s32.totalorder %s22, 1
      %p124 = scmp.ne.s32.totalorder %s119, %s121
      %p125 = scmp.eq.s32.totalorder %s22, 0
      %p126 = por %p124, %p125
      %p127 = scmp.ne.s32.totalorder %s119, %s121
      %p128 = scmp.eq.s32.totalorder %s27, 1
      %p129 = por %p127, %p128
      %p130 = scmp.ne.s32.totalorder %s121, %s122
      %p131 = scmp.eq.s32.totalorder %s27, 0
      %p132 = por %p130, %p131
      %p133 = scmp.ne.s32.totalorder %s121, %s122
      %p134 = scmp.eq.s32.totalorder %s28, 1
      %p135 = por %p133, %p134
      %p137 = scmp.ne.s32.totalorder %s122, %s136
      %p138 = scmp.eq.s32.totalorder %s28, 0
      %p139 = por %p137, %p138
      %s141 = sadd.s32 %s140, 1
      %p144 = scmp.eq.s32.totalorder %s22, 1
      %p145 = scmp.ne.s32.totalorder %s140, %s142
      %p146 = scmp.eq.s32.totalorder %s22, 0
      %p147 = por %p145, %p146
      %p148 = scmp.ne.s32.totalorder %s140, %s142
      %p149 = scmp.eq.s32.totalorder %s27, 1
      %p150 = por %p148, %p149
      %p151 = scmp.ne.s32.totalorder %s142, %s143
      %p152 = scmp.eq.s32.totalorder %s27, 0
      %p153 = por %p151, %p152
      %p154 = scmp.ne.s32.totalorder %s142, %s143
      %p155 = scmp.eq.s32.totalorder %s28, 1
      %p156 = por %p154, %p155
      %p158 = scmp.ne.s32.totalorder %s143, %s157
      %p159 = scmp.eq.s32.totalorder %s28, 0
      %p160 = por %p158, %p159
      %s162 = sadd.s32 %s161, 1
      %p165 = scmp.eq.s32.totalorder %s22, 1
      %p166 = scmp.ne.s32.totalorder %s161, %s163
      %p167 = scmp.eq.s32.totalorder %s22, 0
      %p168 = por %p166, %p167
      %p169 = scmp.ne.s32.totalorder %s161, %s163
      %p170 = scmp.eq.s32.totalorder %s27, 1
      %p171 = por %p169, %p170
      %p172 = scmp.ne.s32.totalorder %s163, %s164
      %p173 = scmp.eq.s32.totalorder %s27, 0
      %p174 = por %p172, %p173
      %p175 = scmp.ne.s32.totalorder %s163, %s164
      %p176 = scmp.eq.s32.totalorder %s28, 1
      %p177 = por %p175, %p176
      %p179 = scmp.ne.s32.totalorder %s164, %s178
      %p180 = scmp.eq.s32.totalorder %s28, 0
      %p181 = por %p179, %p180
      %s183 = sadd.s32 %s182, 1
      %p186 = scmp.eq.s32.totalorder %s22, 1
      %p187 = scmp.ne.s32.totalorder %s182, %s184
      %p188 = scmp.eq.s32.totalorder %s22, 0
      %p189 = por %p187, %p188
      %p190 = scmp.ne.s32.totalorder %s182, %s184
      %p191 = scmp.eq.s32.totalorder %s27, 1
      %p192 = por %p190, %p191
      %p193 = scmp.ne.s32.totalorder %s184, %s185
      %p194 = scmp.eq.s32.totalorder %s27, 0
      %p195 = por %p193, %p194
      %p196 = scmp.ne.s32.totalorder %s184, %s185
      %p197 = scmp.eq.s32.totalorder %s28, 1
      %p198 = por %p196, %p197
      %p200 = scmp.ne.s32.totalorder %s185, %s199
      %p201 = scmp.eq.s32.totalorder %s28, 0
      %p202 = por %p200, %p201
      %s204 = sadd.s32 %s203, 1
      %p207 = scmp.eq.s32.totalorder %s22, 1
      %p208 = scmp.ne.s32.totalorder %s203, %s205
      %p209 = scmp.eq.s32.totalorder %s22, 0
      %p210 = por %p208, %p209
      %p211 = scmp.ne.s32.totalorder %s203, %s205
      %p212 = scmp.eq.s32.totalorder %s27, 1
      %p213 = por %p211, %p212
      %p214 = scmp.ne.s32.totalorder %s205, %s206
      %p215 = scmp.eq.s32.totalorder %s27, 0
      %p216 = por %p214, %p215
      %p217 = scmp.ne.s32.totalorder %s205, %s206
      %p218 = scmp.eq.s32.totalorder %s28, 1
      %p219 = por %p217, %p218
      %p221 = scmp.ne.s32.totalorder %s206, %s220
      %p222 = scmp.eq.s32.totalorder %s28, 0
      %p223 = por %p221, %p222
      %s225 = sadd.s32 %s224, 1
      %p228 = scmp.eq.s32.totalorder %s22, 1
      %p229 = scmp.ne.s32.totalorder %s224, %s226
      %p230 = scmp.eq.s32.totalorder %s22, 0
      %p231 = por %p229, %p230
      %p232 = scmp.ne.s32.totalorder %s224, %s226
      %p233 = scmp.eq.s32.totalorder %s27, 1
      %p234 = por %p232, %p233
      %p235 = scmp.ne.s32.totalorder %s226, %s227
      %p236 = scmp.eq.s32.totalorder %s27, 0
      %p237 = por %p235, %p236
      %p238 = scmp.ne.s32.totalorder %s226, %s227
      %p239 = scmp.eq.s32.totalorder %s28, 1
      %p240 = por %p238, %p239
      %p242 = scmp.ne.s32.totalorder %s227, %s241
      %p243 = scmp.eq.s32.totalorder %s28, 0
      %p244 = por %p242, %p243
      %s246 = sadd.s32 %s245, 1
      %p249 = scmp.eq.s32.totalorder %s22, 1
      %p250 = scmp.ne.s32.totalorder %s245, %s247
      %p251 = scmp.eq.s32.totalorder %s22, 0
      %p252 = por %p250, %p251
      %p253 = scmp.ne.s32.totalorder %s245, %s247
      %p254 = scmp.eq.s32.totalorder %s27, 1
      %p255 = por %p253, %p254
      %p256 = scmp.ne.s32.totalorder %s247, %s248
      %p257 = scmp.eq.s32.totalorder %s27, 0
      %p258 = por %p256, %p257
      %p259 = scmp.ne.s32.totalorder %s247, %s248
      %p260 = scmp.eq.s32.totalorder %s28, 1
      %p261 = por %p259, %p260
      %p263 = scmp.ne.s32.totalorder %s248, %s262
      %p264 = scmp.eq.s32.totalorder %s28, 0
      %p265 = por %p263, %p264
      %s267 = sadd.s32 %s266, 1
      %p270 = scmp.eq.s32.totalorder %s22, 1
      %p271 = scmp.ne.s32.totalorder %s266, %s268
      %p272 = scmp.eq.s32.totalorder %s22, 0
      %p273 = por %p271, %p272
      %p274 = scmp.ne.s32.totalorder %s266, %s268
      %p275 = scmp.eq.s32.totalorder %s27, 1
      %p276 = por %p274, %p275
      %p277 = scmp.ne.s32.totalorder %s268, %s269
      %p278 = scmp.eq.s32.totalorder %s27, 0
      %p279 = por %p277, %p278
      %p280 = scmp.ne.s32.totalorder %s268, %s269
      %p281 = scmp.eq.s32.totalorder %s28, 1
      %p282 = por %p280, %p281
      %p284 = scmp.ne.s32.totalorder %s269, %s283
      %p285 = scmp.eq.s32.totalorder %s28, 0
      %p286 = por %p284, %p285
      %s288 = sadd.s32 %s287, 1
      %p291 = scmp.eq.s32.totalorder %s22, 1
      %p292 = scmp.ne.s32.totalorder %s287, %s289
      %p293 = scmp.eq.s32.totalorder %s22, 0
      %p294 = por %p292, %p293
      %p295 = scmp.ne.s32.totalorder %s287, %s289
      %p296 = scmp.eq.s32.totalorder %s27, 1
      %p297 = por %p295, %p296
      %p298 = scmp.ne.s32.totalorder %s289, %s290
      %p299 = scmp.eq.s32.totalorder %s27, 0
      %p300 = por %p298, %p299
      %p301 = scmp.ne.s32.totalorder %s289, %s290
      %p302 = scmp.eq.s32.totalorder %s28, 1
      %p303 = por %p301, %p302
      %p305 = scmp.ne.s32.totalorder %s290, %s304
      %p306 = scmp.eq.s32.totalorder %s28, 0
      %p307 = por %p305, %p306
      %s308 = ssub.s32 %s22, %s29
      %p309 = scmp.eq.s32.totalorder %s308, 0
      %s311 = sadd.s32 %s310, 1
      %s312 = scalar_select %p309, %s310, %s311
      %p315 = pneg %p309
      %p316 = scmp.eq.s32.totalorder %s22, 1
      %p317 = por %p315, %p316
      %p318 = scmp.ne.s32.totalorder %s310, %s313
      %p319 = scmp.eq.s32.totalorder %s22, 0
      %p320 = por %p318, %p319
      %p321 = scmp.ne.s32.totalorder %s310, %s313
      %p322 = scmp.eq.s32.totalorder %s27, 1
      %p323 = por %p321, %p322
      %p324 = scmp.ne.s32.totalorder %s313, %s314
      %p325 = scmp.eq.s32.totalorder %s27, 0
      %p326 = por %p324, %p325
      %p327 = scmp.ne.s32.totalorder %s313, %s314
      %p328 = scmp.eq.s32.totalorder %s28, 1
      %p329 = por %p327, %p328
      %p331 = scmp.ne.s32.totalorder %s314, %s330
      %p332 = scmp.eq.s32.totalorder %s28, 0
      %p333 = por %p331, %p332
      %p334 = scmp.le.s32.totalorder 1, %s22
      %p335 = scmp.lt.s32.totalorder %s22, 3
      %p336 = pnand %p334, %p335
      %p337 = pneg %p336
      // Predicated region
      $region9: #{tpu_custom_call.1} parent=5 // pred_check
        _
      $region10: #{tpu_custom_call.1} parent=5 // pred_check_branch
        %339 = sbr.rel (%p336) target = $region12
      $region11: #{tpu_custom_call.1} parent=5 // pred_region
        %s340 = ssub.s32 %s22, 1
        // Predicated region
        $region13: #{tpu_custom_call.1} parent=11 // pred_check
          %p341 = pneg %p69
        $region14: #{tpu_custom_call.1} parent=11 // pred_check_branch
          %343 = sbr.rel (%p341) target = $region16
        $region15: #{tpu_custom_call.1} parent=11 // pred_region
          _
        $region16: #{tpu_custom_call.1} parent=11 // pred_fallthru
          _
        // Predicated region
        $region17: #{tpu_custom_call.1} parent=11 // pred_check
          %p344 = pneg %p90
        $region18: #{tpu_custom_call.1} parent=11 // pred_check_branch
          %346 = sbr.rel (%p344) target = $region20
        $region19: #{tpu_custom_call.1} parent=11 // pred_region
          _
        $region20: #{tpu_custom_call.1} parent=11 // pred_fallthru
          _
        // Predicated region
        $region21: #{tpu_custom_call.1} parent=11 // pred_check
          %p347 = pneg %p111
        $region22: #{tpu_custom_call.1} parent=11 // pred_check_branch
          %349 = sbr.rel (%p347) target = $region24
        $region23: #{tpu_custom_call.1} parent=11 // pred_region
          _
        $region24: #{tpu_custom_call.1} parent=11 // pred_fallthru
          _
        // Predicated region
        $region25: #{tpu_custom_call.1} parent=11 // pred_check
          %p350 = pneg %p132
        $region26: #{tpu_custom_call.1} parent=11 // pred_check_branch
          %352 = sbr.rel (%p350) target = $region28
        $region27: #{tpu_custom_call.1} parent=11 // pred_region
          _
        $region28: #{tpu_custom_call.1} parent=11 // pred_fallthru
          _
        // Predicated region
        $region29: #{tpu_custom_call.1} parent=11 // pred_check
          %p353 = pneg %p153
        $region30: #{tpu_custom_call.1} parent=11 // pred_check_branch
          %355 = sbr.rel (%p353) target = $region32
        $region31: #{tpu_custom_call.1} parent=11 // pred_region
          _
        $region32: #{tpu_custom_call.1} parent=11 // pred_fallthru
          _
        // Predicated region
        $region33: #{tpu_custom_call.1} parent=11 // pred_check
          %p356 = pneg %p174
        $region34: #{tpu_custom_call.1} parent=11 // pred_check_branch
          %358 = sbr.rel (%p356) target = $region36
        $region35: #{tpu_custom_call.1} parent=11 // pred_region
          _
        $region36: #{tpu_custom_call.1} parent=11 // pred_fallthru
          _
        // Predicated region
        $region37: #{tpu_custom_call.1} parent=11 // pred_check
          %p359 = pneg %p195
        $region38: #{tpu_custom_call.1} parent=11 // pred_check_branch
          %361 = sbr.rel (%p359) target = $region40
        $region39: #{tpu_custom_call.1} parent=11 // pred_region
          _
        $region40: #{tpu_custom_call.1} parent=11 // pred_fallthru
          _
        // Predicated region
        $region41: #{tpu_custom_call.1} parent=11 // pred_check
          %p362 = pneg %p216
        $region42: #{tpu_custom_call.1} parent=11 // pred_check_branch
          %364 = sbr.rel (%p362) target = $region44
        $region43: #{tpu_custom_call.1} parent=11 // pred_region
          _
        $region44: #{tpu_custom_call.1} parent=11 // pred_fallthru
          _
        // Predicated region
        $region45: #{tpu_custom_call.1} parent=11 // pred_check
          %p365 = pneg %p237
        $region46: #{tpu_custom_call.1} parent=11 // pred_check_branch
          %367 = sbr.rel (%p365) target = $region48
        $region47: #{tpu_custom_call.1} parent=11 // pred_region
          _
        $region48: #{tpu_custom_call.1} parent=11 // pred_fallthru
          _
        // Predicated region
        $region49: #{tpu_custom_call.1} parent=11 // pred_check
          %p368 = pneg %p258
        $region50: #{tpu_custom_call.1} parent=11 // pred_check_branch
          %370 = sbr.rel (%p368) target = $region52
        $region51: #{tpu_custom_call.1} parent=11 // pred_region
          _
        $region52: #{tpu_custom_call.1} parent=11 // pred_fallthru
          _
        // Predicated region
        $region53: #{tpu_custom_call.1} parent=11 // pred_check
          %p371 = pneg %p279
        $region54: #{tpu_custom_call.1} parent=11 // pred_check_branch
          %373 = sbr.rel (%p371) target = $region56
        $region55: #{tpu_custom_call.1} parent=11 // pred_region
          _
        $region56: #{tpu_custom_call.1} parent=11 // pred_fallthru
          _
        // Predicated region
        $region57: #{tpu_custom_call.1} parent=11 // pred_check
          %p374 = pneg %p300
        $region58: #{tpu_custom_call.1} parent=11 // pred_check_branch
          %376 = sbr.rel (%p374) target = $region60
        $region59: #{tpu_custom_call.1} parent=11 // pred_region
          _
        $region60: #{tpu_custom_call.1} parent=11 // pred_fallthru
          _
      $region12: #{tpu_custom_call.1} parent=5 // pred_fallthru
        _
      %p377 = scmp.lt.s32.totalorder %s22, 2
      // Predicated region
      $region61: #{tpu_custom_call.1} parent=5 // pred_check
        %p378 = pneg %p377
      $region62: #{tpu_custom_call.1} parent=5 // pred_check_branch
        %380 = sbr.rel (%p378) target = $region64
      $region63: #{tpu_custom_call.1} parent=5 // pred_region
        // Predicated region
        $region65: #{tpu_custom_call.1} parent=63 // pred_check
          %p381 = pneg %p42
        $region66: #{tpu_custom_call.1} parent=63 // pred_check_branch
          %383 = sbr.rel (%p381) target = $region68
        $region67: #{tpu_custom_call.1} parent=63 // pred_region
          %p384 = scmp.lt.s32.totalorder %s22, 1
          %s385 = scalar_select %p384, %s22, 1
          %s386 = smul.addr %s385, 8
          %s387 = scalar_lea.vmem %s0, %s386
        $region68: #{tpu_custom_call.1} parent=63 // pred_fallthru
          _
      $region64: #{tpu_custom_call.1} parent=5 // pred_fallthru
        _
      %p388 = scmp.le.s32.totalorder 1, %s22
      %p389 = scmp.lt.s32.totalorder %s22, 3
      %p390 = pnand %p388, %p389
      %p391 = pneg %p390
      // Predicated region
      $region69: #{tpu_custom_call.1} parent=5 // pred_check
        _
      $region70: #{tpu_custom_call.1} parent=5 // pred_check_branch
        %393 = sbr.rel (%p390) target = $region72
      $region71: #{tpu_custom_call.1} parent=5 // pred_region
        %s394 = ssub.s32 %s22, 1
        %p395 = scmp.lt.s32.totalorder %s27, 1
        %s396 = scalar_select %p395, %s27, 1
        %s397 = smul.addr %s396, 8
        %s398 = scalar_lea.vmem %s0, %s397
        %p399 = pneg %p48
        %p400 = pneg %p45
        %p401 = pneg %p69
        %p402 = pneg %p66
        %p403 = pneg %p90
        %p404 = pneg %p87
        %p405 = pneg %p111
        %p406 = pneg %p108
        %p407 = pneg %p132
        %p408 = pneg %p129
        %p409 = pneg %p153
        %p410 = pneg %p150
        %p411 = pneg %p174
        %p412 = pneg %p171
        %p413 = pneg %p195
        %p414 = pneg %p192
        %p415 = pneg %p216
        %p416 = pneg %p213
        %p417 = pneg %p237
        %p418 = pneg %p234
        %p419 = pneg %p258
        %p420 = pneg %p255
        %p421 = pneg %p279
        %p422 = pneg %p276
        %p423 = pneg %p300
        %p424 = pneg %p297
        %p425 = pneg %p326
        %p426 = pneg %p323
        %s427 = sand.u32 %s313, 1
        %s428 = scalar_lea.sflag [#allocation5], %s427
        %s429 = sand.u32 %s313, 1
        %s430 = smul.addr %s429, 8
        %s431 = scalar_lea.vmem [#allocation4], %s430
        %p432 = scmp.lt.s32.totalorder %s27, 1
        %s433 = scalar_select %p432, %s27, 1
        %s434 = smul.addr %s433, 8
        %s435 = scalar_lea.vmem %s0, %s434
        %v437 = vld [vmem:[%s435] sm:$0xff]
        %v438 = vld [vmem:[%s1] sm:$0x1]
        %v439 = vld [vmem:[%s2] sm:$0x1]
        %vm440 = vcmask 261120
        %v441 = vsel %vm440, %v437, 0.0
        %442 = vadd.xlane.f32.xlu0 %v441
        %v443 = vpop.xlane.xlu0 %442
        %v444 = vrcp.pop 32.0
        %v445 = vmul.f32 %v443, %v444
        %v446 = vsub.f32 %v437, %v445
        %v447 = vmul.f32 %v446, %v446
        %v448 = vsel %vm440, %v447, 0.0
        %449 = vadd.xlane.f32.xlu0 %v448
        %v450 = vpop.xlane.xlu0 %449
        %v451 = vmul.f32 %v450, %v444
        %v452 = vadd.f32 %v451, 1e-05
        %v453 = vrsqrt.pop %v452
        %v454 = vmul.f32 %v446, %v453
        %v456 = vlaneseq
        %v457 = vshrl.u32 %v456, 7
        %v458 = vsub.s32 0, %v457
        %v459 = vrot.slane %v438, %v458
        %v461 = vmul.f32 %v454, %v459
        %v463 = vlaneseq
        %v464 = vshrl.u32 %v463, 7
        %v465 = vsub.s32 0, %v464
        %v466 = vrot.slane %v439, %v465
        %v468 = vadd.f32 %v461, %v466
        %v469 = vpack.c.bf16 %v468, %v468
        %v470 = vld [vmem:[%s3] sm:$0xf]
        %v471 = vld [vmem:[%s3 + $0x4] sm:$0xf]
        %v472 = vld [vmem:[%s3 + $0x8] sm:$0xf]
        %v473 = vld [vmem:[%s3 + $0xc] sm:$0xf]
        %v474 = vld [vmem:[%s4] sm:$0x1]
        %v476 = vlaneseq
        %v477 = vshrl.u32 %v476, 7
        %v478 = vsub.s32 0, %v477
        %v479 = vrot.slane %v474, %v478
        %v485 = vunpack.c.l.b16 %v470
        %v486 = vunpack.c.l.b16 %v471
        %v487 = vunpack.c.l.b16 %v472
        %v488 = vunpack.c.l.b16 %v473
        %v489 = vpack.c.b16 %v486, %v485
        %v490 = vpack.c.b16 %v488, %v487
        %v494 = vsel %vm440, %v469, 0
        %496 = vmatprep.subr.bf16.mxu0 0
        %497 = vmatpush1.bf16.msra.mxu0 %v489
        %498 = vmatprep.subr.bf16.mxu0 0
        %499 = vmatpush1.bf16.msra.mxu0 %v490
        %500 = vmatprep.subr.bf16.mxu0 0
        %501 = vmatpush1.bf16.msra.mxu0 0
        %502 = vmatprep.subr.bf16.mxu0 0
        %503 = vmatpush1.bf16.msra.mxu0 0
        %504 = vmatprep.subr.bf16.mxu0 0
        %505 = vmatpush1.bf16.msra.mxu0 0
        %506 = vmatprep.subr.bf16.mxu0 0
        %507 = vmatpush1.bf16.msra.mxu0 0
        %508 = vmatprep.subr.bf16.mxu0 0
        %509 = vmatpush1.bf16.msra.mxu0 0
        %510 = vmatprep.subr.bf16.mxu0 0
        %511 = vmatpush1.bf16.msra.mxu0 0
        %512 = vmatprep.subr.bf16.mxu0 0
        %513 = vmatpush1.bf16.msra.mxu0 0
        %514 = vmatprep.subr.bf16.mxu0 0
        %515 = vmatpush1.bf16.msra.mxu0 0
        %516 = vmatprep.subr.bf16.mxu0 0
        %517 = vmatpush1.bf16.msra.mxu0 0
        %518 = vmatprep.subr.bf16.mxu0 0
        %519 = vmatpush1.bf16.msra.mxu0 0
        %520 = vmatprep.subr.bf16.mxu0 0
        %521 = vmatpush1.bf16.msra.mxu0 0
        %522 = vmatprep.subr.bf16.mxu0 0
        %523 = vmatpush1.bf16.msra.mxu0 0
        %524 = vmatprep.subr.bf16.mxu0 0
        %525 = vmatpush1.bf16.msra.mxu0 0
        %526 = vmatprep.subr.bf16.mxu0 0
        %527 = vmatpush1.bf16.msra.mxu0 0
        %528 = vmatprep.mubr.bf16.mxu0 0
        %529 = vmatmul.mubr.bf16.gmra.mrb[0].mxu0 %v494
        %v530 = vpop.f32.mrb[0].mxu0
        %v531 = vadd.f32 %v479, %v530
        %v532 = vpop.f32.mrb[0].mxu0
        %v533 = vpop.f32.mrb[0].mxu0
        %v534 = vpop.f32.mrb[0].mxu0
        %535 = vdwg.mxu0
        %v536 = vpack.c.bf16 %v531, %v531
        %538 = vrot.lane.b32.xlu0 %v536, 96
        %v539 = vpop.permute.xlu0 %538
        %vm540 = vcmask 64512
        %v542 = vsel %vm540, %v536, 0
        %v545 = vsel %vm540, %v539, 0
        %547 = vmatprep.subr.bf16.mxu0 0
        %548 = vmatpush1.bf16.xpose.msra.mxu0 %v545
        %549 = vmatprep.subr.bf16.mxu0 0
        %550 = vmatpush1.bf16.xpose.msra.mxu0 0
        %551 = vmatprep.subr.bf16.mxu0 0
        %552 = vmatpush1.bf16.xpose.msra.mxu0 0
        %553 = vmatprep.subr.bf16.mxu0 0
        %554 = vmatpush1.bf16.xpose.msra.mxu0 0
        %555 = vmatprep.subr.bf16.mxu0 0
        %556 = vmatpush1.bf16.xpose.msra.mxu0 0
        %557 = vmatprep.subr.bf16.mxu0 0
        %558 = vmatpush1.bf16.xpose.msra.mxu0 0
        %559 = vmatprep.subr.bf16.mxu0 0
        %560 = vmatpush1.bf16.xpose.msra.mxu0 0
        %561 = vmatprep.subr.bf16.mxu0 0
        %562 = vmatpush1.bf16.xpose.msra.mxu0 0
        %563 = vmatprep.subr.bf16.mxu0 0
        %564 = vmatpush1.bf16.xpose.msra.mxu0 0
        %565 = vmatprep.subr.bf16.mxu0 0
        %566 = vmatpush1.bf16.xpose.msra.mxu0 0
        %567 = vmatprep.subr.bf16.mxu0 0
        %568 = vmatpush1.bf16.xpose.msra.mxu0 0
        %569 = vmatprep.subr.bf16.mxu0 0
        %570 = vmatpush1.bf16.xpose.msra.mxu0 0
        %571 = vmatprep.subr.bf16.mxu0 0
        %572 = vmatpush1.bf16.xpose.msra.mxu0 0
        %573 = vmatprep.subr.bf16.mxu0 0
        %574 = vmatpush1.bf16.xpose.msra.mxu0 0
        %575 = vmatprep.subr.bf16.mxu0 0
        %576 = vmatpush1.bf16.xpose.msra.mxu0 0
        %577 = vmatprep.subr.bf16.mxu0 0
        %578 = vmatpush1.bf16.xpose.msra.mxu0 0
        %579 = vmatprep.mubr.bf16.mxu0 0
        %580 = vmatmul.mubr.bf16.gmra.mrb[0].mxu0 %v542
        %v581 = vpop.f32.mrb[0].mxu0
        %v582 = vadd.f32 0.0, %v581
        %v583 = vpop.f32.mrb[0].mxu0
        %v584 = vpop.f32.mrb[0].mxu0
        %v585 = vpop.f32.mrb[0].mxu0
        %586 = vdwg.mxu0
        %v587 = vsel %vm540, %v582, -inf
        %588 = vmax.xlane.f32.xlu0 %v587
        %v589 = vpop.xlane.xlu0 %588
        %v590 = vsub.f32 %v582, %v589
        %v591 = vmul.f32 %v590, 1.442695
        %v592 = vpow.pop %v591
        %v593 = vsel %vm540, %v592, 0.0
        %594 = vadd.xlane.f32.xlu0 %v593
        %v595 = vpop.xlane.xlu0 %594
        %v596 = vrcp.pop %v595
        %v597 = vmul.f32 %v592, %v596
        %v598 = vpack.c.bf16 %v597, %v597
        %599 = vrot.lane.b32.xlu0 %v536, 64
        %v600 = vpop.permute.xlu0 %599
        %v602 = vsel %vm540, %v598, 0
        %vm604 = vcmask 1043456
        %v606 = vsel %vm604, %v600, 0
        %608 = vmatprep.subr.bf16.mxu0 0
        %609 = vmatpush1.bf16.msra.mxu0 %v606
        %610 = vmatprep.subr.bf16.mxu0 0
        %611 = vmatpush1.bf16.msra.mxu0 0
        %612 = vmatprep.subr.bf16.mxu0 0
        %613 = vmatpush1.bf16.msra.mxu0 0
        %614 = vmatprep.subr.bf16.mxu0 0
        %615 = vmatpush1.bf16.msra.mxu0 0
        %616 = vmatprep.subr.bf16.mxu0 0
        %617 = vmatpush1.bf16.msra.mxu0 0
        %618 = vmatprep.subr.bf16.mxu0 0
        %619 = vmatpush1.bf16.msra.mxu0 0
        %620 = vmatprep.subr.bf16.mxu0 0
        %621 = vmatpush1.bf16.msra.mxu0 0
        %622 = vmatprep.subr.bf16.mxu0 0
        %623 = vmatpush1.bf16.msra.mxu0 0
        %624 = vmatprep.subr.bf16.mxu0 0
        %625 = vmatpush1.bf16.msra.mxu0 0
        %626 = vmatprep.subr.bf16.mxu0 0
        %627 = vmatpush1.bf16.msra.mxu0 0
        %628 = vmatprep.subr.bf16.mxu0 0
        %629 = vmatpush1.bf16.msra.mxu0 0
        %630 = vmatprep.subr.bf16.mxu0 0
        %631 = vmatpush1.bf16.msra.mxu0 0
        %632 = vmatprep.subr.bf16.mxu0 0
        %633 = vmatpush1.bf16.msra.mxu0 0
        %634 = vmatprep.subr.bf16.mxu0 0
        %635 = vmatpush1.bf16.msra.mxu0 0
        %636 = vmatprep.subr.bf16.mxu0 0
        %637 = vmatpush1.bf16.msra.mxu0 0
        %638 = vmatprep.subr.bf16.mxu0 0
        %639 = vmatpush1.bf16.msra.mxu0 0
        %640 = vmatprep.mubr.bf16.mxu0 0
        %641 = vmatmul.mubr.bf16.gmra.mrb[0].mxu0 %v602
        %v642 = vpop.f32.mrb[0].mxu0
        %v643 = vadd.f32 0.0, %v642
        %v644 = vpop.f32.mrb[0].mxu0
        %v645 = vpop.f32.mrb[0].mxu0
        %v646 = vpop.f32.mrb[0].mxu0
        %647 = vdwg.mxu0
        %648 = vrot.lane.b32.xlu0 %v536, 120
        %v649 = vpop.permute.xlu0 %648
        %650 = vrot.lane.b32.xlu0 %v536, 88
        %v651 = vpop.permute.xlu0 %650
        %v653 = vsel %vm540, %v649, 0
        %v656 = vsel %vm540, %v651, 0
        %658 = vmatprep.subr.bf16.mxu0 0
        %659 = vmatpush1.bf16.xpose.msra.mxu0 %v656
        %660 = vmatprep.subr.bf16.mxu0 0
        %661 = vmatpush1.bf16.xpose.msra.mxu0 0
        %662 = vmatprep.subr.bf16.mxu0 0
        %663 = vmatpush1.bf16.xpose.msra.mxu0 0
        %664 = vmatprep.subr.bf16.mxu0 0
        %665 = vmatpush1.bf16.xpose.msra.mxu0 0
        %666 = vmatprep.subr.bf16.mxu0 0
        %667 = vmatpush1.bf16.xpose.msra.mxu0 0
        %668 = vmatprep.subr.bf16.mxu0 0
        %669 = vmatpush1.bf16.xpose.msra.mxu0 0
        %670 = vmatprep.subr.bf16.mxu0 0
        %671 = vmatpush1.bf16.xpose.msra.mxu0 0
        %672 = vmatprep.subr.bf16.mxu0 0
        %673 = vmatpush1.bf16.xpose.msra.mxu0 0
        %674 = vmatprep.subr.bf16.mxu0 0
        %675 = vmatpush1.bf16.xpose.msra.mxu0 0
        %676 = vmatprep.subr.bf16.mxu0 0
        %677 = vmatpush1.bf16.xpose.msra.mxu0 0
        %678 = vmatprep.subr.bf16.mxu0 0
        %679 = vmatpush1.bf16.xpose.msra.mxu0 0
        %680 = vmatprep.subr.bf16.mxu0 0
        %681 = vmatpush1.bf16.xpose.msra.mxu0 0
        %682 = vmatprep.subr.bf16.mxu0 0
        %683 = vmatpush1.bf16.xpose.msra.mxu0 0
        %684 = vmatprep.subr.bf16.mxu0 0
        %685 = vmatpush1.bf16.xpose.msra.mxu0 0
        %686 = vmatprep.subr.bf16.mxu0 0
        %687 = vmatpush1.bf16.xpose.msra.mxu0 0
        %688 = vmatprep.subr.bf16.mxu0 0
        %689 = vmatpush1.bf16.xpose.msra.mxu0 0
        %690 = vmatprep.mubr.bf16.mxu0 0
        %691 = vmatmul.mubr.bf16.gmra.mrb[0].mxu0 %v653
        %v692 = vpop.f32.mrb[0].mxu0
        %v693 = vadd.f32 0.0, %v692
        %v694 = vpop.f32.mrb[0].mxu0
        %v695 = vpop.f32.mrb[0].mxu0
        %v696 = vpop.f32.mrb[0].mxu0
        %697 = vdwg.mxu0
        %v698 = vsel %vm540, %v693, -inf
        %699 = vmax.xlane.f32.xlu0 %v698
        %v700 = vpop.xlane.xlu0 %699
        %v701 = vsub.f32 %v693, %v700
        %v702 = vmul.f32 %v701, 1.442695
        %v703 = vpow.pop %v702
        %v704 = vsel %vm540, %v703, 0.0
        %705 = vadd.xlane.f32.xlu0 %v704
        %v706 = vpop.xlane.xlu0 %705
        %v707 = vrcp.pop %v706
        %v708 = vmul.f32 %v703, %v707
        %v709 = vpack.c.bf16 %v708, %v708
        %710 = vrot.lane.b32.xlu0 %v536, 56
        %v711 = vpop.permute.xlu0 %710
        %v713 = vsel %vm540, %v709, 0
        %v716 = vsel %vm604, %v711, 0
        %718 = vmatprep.subr.bf16.mxu0 0
        %719 = vmatpush1.bf16.msra.mxu0 %v716
        %720 = vmatprep.subr.bf16.mxu0 0
        %721 = vmatpush1.bf16.msra.mxu0 0
        %722 = vmatprep.subr.bf16.mxu0 0
        %723 = vmatpush1.bf16.msra.mxu0 0
        %724 = vmatprep.subr.bf16.mxu0 0
        %725 = vmatpush1.bf16.msra.mxu0 0
        %726 = vmatprep.subr.bf16.mxu0 0
        %727 = vmatpush1.bf16.msra.mxu0 0
        %728 = vmatprep.subr.bf16.mxu0 0
        %729 = vmatpush1.bf16.msra.mxu0 0
        %730 = vmatprep.subr.bf16.mxu0 0
        %731 = vmatpush1.bf16.msra.mxu0 0
        %732 = vmatprep.subr.bf16.mxu0 0
        %733 = vmatpush1.bf16.msra.mxu0 0
        %734 = vmatprep.subr.bf16.mxu0 0
        %735 = vmatpush1.bf16.msra.mxu0 0
        %736 = vmatprep.subr.bf16.mxu0 0
        %737 = vmatpush1.bf16.msra.mxu0 0
        %738 = vmatprep.subr.bf16.mxu0 0
        %739 = vmatpush1.bf16.msra.mxu0 0
        %740 = vmatprep.subr.bf16.mxu0 0
        %741 = vmatpush1.bf16.msra.mxu0 0
        %742 = vmatprep.subr.bf16.mxu0 0
        %743 = vmatpush1.bf16.msra.mxu0 0
        %744 = vmatprep.subr.bf16.mxu0 0
        %745 = vmatpush1.bf16.msra.mxu0 0
        %746 = vmatprep.subr.bf16.mxu0 0
        %747 = vmatpush1.bf16.msra.mxu0 0
        %748 = vmatprep.subr.bf16.mxu0 0
        %749 = vmatpush1.bf16.msra.mxu0 0
        %750 = vmatprep.mubr.bf16.mxu0 0
        %751 = vmatmul.mubr.bf16.gmra.mrb[0].mxu0 %v713
        %v752 = vpop.f32.mrb[0].mxu0
        %v753 = vadd.f32 0.0, %v752
        %v754 = vpop.f32.mrb[0].mxu0
        %v755 = vpop.f32.mrb[0].mxu0
        %v756 = vpop.f32.mrb[0].mxu0
        %757 = vdwg.mxu0
        %759 = vrot.lane.b32.xlu0 %v753, 8
        %v760 = vpop.permute.xlu0 %759
        %v762 = vsel %vm540, %v643, %v760
        %v763 = vpack.c.bf16 %v762, %v762
        %vm764 = vcmask 125952
        %765 = vst.msk [vmem:[#allocation2] sm:$0xf] %vm764, %v763
        %766 = vrot.lane.b32.xlu0 %v536, 112
        %v767 = vpop.permute.xlu0 %766
        %768 = vrot.lane.b32.xlu0 %v536, 80
        %v769 = vpop.permute.xlu0 %768
        %v771 = vsel %vm540, %v767, 0
        %v774 = vsel %vm540, %v769, 0
        %776 = vmatprep.subr.bf16.mxu0 0
        %777 = vmatpush1.bf16.xpose.msra.mxu0 %v774
        %778 = vmatprep.subr.bf16.mxu0 0
        %779 = vmatpush1.bf16.xpose.msra.mxu0 0
        %780 = vmatprep.subr.bf16.mxu0 0
        %781 = vmatpush1.bf16.xpose.msra.mxu0 0
        %782 = vmatprep.subr.bf16.mxu0 0
        %783 = vmatpush1.bf16.xpose.msra.mxu0 0
        %784 = vmatprep.subr.bf16.mxu0 0
        %785 = vmatpush1.bf16.xpose.msra.mxu0 0
        %786 = vmatprep.subr.bf16.mxu0 0
        %787 = vmatpush1.bf16.xpose.msra.mxu0 0
        %788 = vmatprep.subr.bf16.mxu0 0
        %789 = vmatpush1.bf16.xpose.msra.mxu0 0
        %790 = vmatprep.subr.bf16.mxu0 0
        %791 = vmatpush1.bf16.xpose.msra.mxu0 0
        %792 = vmatprep.subr.bf16.mxu0 0
        %793 = vmatpush1.bf16.xpose.msra.mxu0 0
        %794 = vmatprep.subr.bf16.mxu0 0
        %795 = vmatpush1.bf16.xpose.msra.mxu0 0
        %796 = vmatprep.subr.bf16.mxu0 0
        %797 = vmatpush1.bf16.xpose.msra.mxu0 0
        %798 = vmatprep.subr.bf16.mxu0 0
        %799 = vmatpush1.bf16.xpose.msra.mxu0 0
        %800 = vmatprep.subr.bf16.mxu0 0
        %801 = vmatpush1.bf16.xpose.msra.mxu0 0
        %802 = vmatprep.subr.bf16.mxu0 0
        %803 = vmatpush1.bf16.xpose.msra.mxu0 0
        %804 = vmatprep.subr.bf16.mxu0 0
        %805 = vmatpush1.bf16.xpose.msra.mxu0 0
        %806 = vmatprep.subr.bf16.mxu0 0
        %807 = vmatpush1.bf16.xpose.msra.mxu0 0
        %808 = vmatprep.mubr.bf16.mxu0 0
        %809 = vmatmul.mubr.bf16.gmra.mrb[0].mxu0 %v771
        %v810 = vpop.f32.mrb[0].mxu0
        %v811 = vadd.f32 0.0, %v810
        %v812 = vpop.f32.mrb[0].mxu0
        %v813 = vpop.f32.mrb[0].mxu0
        %v814 = vpop.f32.mrb[0].mxu0
        %815 = vdwg.mxu0
        %v816 = vsel %vm540, %v811, -inf
        %817 = vmax.xlane.f32.xlu0 %v816
        %v818 = vpop.xlane.xlu0 %817
        %v819 = vsub.f32 %v811, %v818
        %v820 = vmul.f32 %v819, 1.442695
        %v821 = vpow.pop %v820
        %v822 = vsel %vm540, %v821, 0.0
        %823 = vadd.xlane.f32.xlu0 %v822
        %v824 = vpop.xlane.xlu0 %823
        %v825 = vrcp.pop %v824
        %v826 = vmul.f32 %v821, %v825
        %v827 = vpack.c.bf16 %v826, %v826
        %828 = vrot.lane.b32.xlu0 %v536, 48
        %v829 = vpop.permute.xlu0 %828
        %v831 = vsel %vm540, %v827, 0
        %v834 = vsel %vm604, %v829, 0
        %836 = vmatprep.subr.bf16.mxu0 0
        %837 = vmatpush1.bf16.msra.mxu0 %v834
        %838 = vmatprep.subr.bf16.mxu0 0
        %839 = vmatpush1.bf16.msra.mxu0 0
        %840 = vmatprep.subr.bf16.mxu0 0
        %841 = vmatpush1.bf16.msra.mxu0 0
        %842 = vmatprep.subr.bf16.mxu0 0
        %843 = vmatpush1.bf16.msra.mxu0 0
        %844 = vmatprep.subr.bf16.mxu0 0
        %845 = vmatpush1.bf16.msra.mxu0 0
        %846 = vmatprep.subr.bf16.mxu0 0
        %847 = vmatpush1.bf16.msra.mxu0 0
        %848 = vmatprep.subr.bf16.mxu0 0
        %849 = vmatpush1.bf16.msra.mxu0 0
        %850 = vmatprep.subr.bf16.mxu0 0
        %851 = vmatpush1.bf16.msra.mxu0 0
        %852 = vmatprep.subr.bf16.mxu0 0
        %853 = vmatpush1.bf16.msra.mxu0 0
        %854 = vmatprep.subr.bf16.mxu0 0
        %855 = vmatpush1.bf16.msra.mxu0 0
        %856 = vmatprep.subr.bf16.mxu0 0
        %857 = vmatpush1.bf16.msra.mxu0 0
        %858 = vmatprep.subr.bf16.mxu0 0
        %859 = vmatpush1.bf16.msra.mxu0 0
        %860 = vmatprep.subr.bf16.mxu0 0
        %861 = vmatpush1.bf16.msra.mxu0 0
        %862 = vmatprep.subr.bf16.mxu0 0
        %863 = vmatpush1.bf16.msra.mxu0 0
        %864 = vmatprep.subr.bf16.mxu0 0
        %865 = vmatpush1.bf16.msra.mxu0 0
        %866 = vmatprep.subr.bf16.mxu0 0
        %867 = vmatpush1.bf16.msra.mxu0 0
        %868 = vmatprep.mubr.bf16.mxu0 0
        %869 = vmatmul.mubr.bf16.gmra.mrb[0].mxu0 %v831
        %v870 = vpop.f32.mrb[0].mxu0
        %v871 = vadd.f32 0.0, %v870
        %v872 = vpop.f32.mrb[0].mxu0
        %v873 = vpop.f32.mrb[0].mxu0
        %v874 = vpop.f32.mrb[0].mxu0
        %875 = vdwg.mxu0
        %876 = vrot.lane.b32.xlu0 %v536, 104
        %v877 = vpop.permute.xlu0 %876
        %878 = vrot.lane.b32.xlu0 %v536, 72
        %v879 = vpop.permute.xlu0 %878
        %v881 = vsel %vm540, %v877, 0
        %v884 = vsel %vm540, %v879, 0
        %886 = vmatprep.subr.bf16.mxu0 0
        %887 = vmatpush1.bf16.xpose.msra.mxu0 %v884
        %888 = vmatprep.subr.bf16.mxu0 0
        %889 = vmatpush1.bf16.xpose.msra.mxu0 0
        %890 = vmatprep.subr.bf16.mxu0 0
        %891 = vmatpush1.bf16.xpose.msra.mxu0 0
        %892 = vmatprep.subr.bf16.mxu0 0
        %893 = vmatpush1.bf16.xpose.msra.mxu0 0
        %894 = vmatprep.subr.bf16.mxu0 0
        %895 = vmatpush1.bf16.xpose.msra.mxu0 0
        %896 = vmatprep.subr.bf16.mxu0 0
        %897 = vmatpush1.bf16.xpose.msra.mxu0 0
        %898 = vmatprep.subr.bf16.mxu0 0
        %899 = vmatpush1.bf16.xpose.msra.mxu0 0
        %900 = vmatprep.subr.bf16.mxu0 0
        %901 = vmatpush1.bf16.xpose.msra.mxu0 0
        %902 = vmatprep.subr.bf16.mxu0 0
        %903 = vmatpush1.bf16.xpose.msra.mxu0 0
        %904 = vmatprep.subr.bf16.mxu0 0
        %905 = vmatpush1.bf16.xpose.msra.mxu0 0
        %906 = vmatprep.subr.bf16.mxu0 0
        %907 = vmatpush1.bf16.xpose.msra.mxu0 0
        %908 = vmatprep.subr.bf16.mxu0 0
        %909 = vmatpush1.bf16.xpose.msra.mxu0 0
        %910 = vmatprep.subr.bf16.mxu0 0
        %911 = vmatpush1.bf16.xpose.msra.mxu0 0
        %912 = vmatprep.subr.bf16.mxu0 0
        %913 = vmatpush1.bf16.xpose.msra.mxu0 0
        %914 = vmatprep.subr.bf16.mxu0 0
        %915 = vmatpush1.bf16.xpose.msra.mxu0 0
        %916 = vmatprep.subr.bf16.mxu0 0
        %917 = vmatpush1.bf16.xpose.msra.mxu0 0
        %918 = vmatprep.mubr.bf16.mxu0 0
        %919 = vmatmul.mubr.bf16.gmra.mrb[0].mxu0 %v881
        %v920 = vpop.f32.mrb[0].mxu0
        %v921 = vadd.f32 0.0, %v920
        %v922 = vpop.f32.mrb[0].mxu0
        %v923 = vpop.f32.mrb[0].mxu0
        %v924 = vpop.f32.mrb[0].mxu0
        %925 = vdwg.mxu0
        %v926 = vsel %vm540, %v921, -inf
        %927 = vmax.xlane.f32.xlu0 %v926
        %v928 = vpop.xlane.xlu0 %927
        %v929 = vsub.f32 %v921, %v928
        %v930 = vmul.f32 %v929, 1.442695
        %v931 = vpow.pop %v930
        %v932 = vsel %vm540, %v931, 0.0
        %933 = vadd.xlane.f32.xlu0 %v932
        %v934 = vpop.xlane.xlu0 %933
        %v935 = vrcp.pop %v934
        %v936 = vmul.f32 %v931, %v935
        %v937 = vpack.c.bf16 %v936, %v936
        %938 = vrot.lane.b32.xlu0 %v536, 40
        %v939 = vpop.permute.xlu0 %938
        %v941 = vsel %vm540, %v937, 0
        %v944 = vsel %vm604, %v939, 0
        %946 = vmatprep.subr.bf16.mxu0 0
        %947 = vmatpush1.bf16.msra.mxu0 %v944
        %948 = vmatprep.subr.bf16.mxu0 0
        %949 = vmatpush1.bf16.msra.mxu0 0
        %950 = vmatprep.subr.bf16.mxu0 0
        %951 = vmatpush1.bf16.msra.mxu0 0
        %952 = vmatprep.subr.bf16.mxu0 0
        %953 = vmatpush1.bf16.msra.mxu0 0
        %954 = vmatprep.subr.bf16.mxu0 0
        %955 = vmatpush1.bf16.msra.mxu0 0
        %956 = vmatprep.subr.bf16.mxu0 0
        %957 = vmatpush1.bf16.msra.mxu0 0
        %958 = vmatprep.subr.bf16.mxu0 0
        %959 = vmatpush1.bf16.msra.mxu0 0
        %960 = vmatprep.subr.bf16.mxu0 0
        %961 = vmatpush1.bf16.msra.mxu0 0
        %962 = vmatprep.subr.bf16.mxu0 0
        %963 = vmatpush1.bf16.msra.mxu0 0
        %964 = vmatprep.subr.bf16.mxu0 0
        %965 = vmatpush1.bf16.msra.mxu0 0
        %966 = vmatprep.subr.bf16.mxu0 0
        %967 = vmatpush1.bf16.msra.mxu0 0
        %968 = vmatprep.subr.bf16.mxu0 0
        %969 = vmatpush1.bf16.msra.mxu0 0
        %970 = vmatprep.subr.bf16.mxu0 0
        %971 = vmatpush1.bf16.msra.mxu0 0
        %972 = vmatprep.subr.bf16.mxu0 0
        %973 = vmatpush1.bf16.msra.mxu0 0
        %974 = vmatprep.subr.bf16.mxu0 0
        %975 = vmatpush1.bf16.msra.mxu0 0
        %976 = vmatprep.subr.bf16.mxu0 0
        %977 = vmatpush1.bf16.msra.mxu0 0
        %978 = vmatprep.mubr.bf16.mxu0 0
        %979 = vmatmul.mubr.bf16.gmra.mrb[0].mxu0 %v941
        %v980 = vpop.f32.mrb[0].mxu0
        %v981 = vadd.f32 0.0, %v980
        %v982 = vpop.f32.mrb[0].mxu0
        %v983 = vpop.f32.mrb[0].mxu0
        %v984 = vpop.f32.mrb[0].mxu0
        %985 = vdwg.mxu0
        %987 = vrot.lane.b32.xlu0 %v981, 8
        %v988 = vpop.permute.xlu0 %987
        %v990 = vsel %vm540, %v871, %v988
        %v991 = vpack.c.bf16 %v990, %v990
        %v993 = vunpack.c.l.b16 %v991
        %v994 = vpack.c.b16 %v993, %v993
        %995 = vrot.lane.b32.xlu0 %v994, 16
        %v996 = vpop.permute.xlu0 %995
        %vm998 = vcmask 257152
        %999 = vst.msk [vmem:[#allocation2] sm:$0xf] %vm998, %v996
        %v1000 = vld [vmem:[#allocation2] sm:$0xf]
        %v1001 = vld [vmem:[%s5] sm:$0xf]
        %v1002 = vld [vmem:[%s5 + $0x4] sm:$0xf]
        %v1003 = vld [vmem:[%s5 + $0x8] sm:$0xf]
        %v1004 = vld [vmem:[%s5 + $0xc] sm:$0xf]
        %v1005 = vld [vmem:[%s6] sm:$0x1]
        %v1007 = vlaneseq
        %v1008 = vshrl.u32 %v1007, 7
        %v1009 = vsub.s32 0, %v1008
        %v1010 = vrot.slane %v1005, %v1009
        %v1016 = vunpack.c.l.b16 %v1001
        %v1017 = vunpack.c.l.b16 %v1002
        %v1018 = vunpack.c.l.b16 %v1003
        %v1019 = vunpack.c.l.b16 %v1004
        %v1020 = vpack.c.b16 %v1017, %v1016
        %v1021 = vpack.c.b16 %v1019, %v1018
        %v1025 = vsel %vm440, %v1000, 0
        %1027 = vmatprep.subr.bf16.mxu0 0
        %1028 = vmatpush1.bf16.msra.mxu0 %v1020
        %1029 = vmatprep.subr.bf16.mxu0 0
        %1030 = vmatpush1.bf16.msra.mxu0 %v1021
        %1031 = vmatprep.subr.bf16.mxu0 0
        %1032 = vmatpush1.bf16.msra.mxu0 0
        %1033 = vmatprep.subr.bf16.mxu0 0
        %1034 = vmatpush1.bf16.msra.mxu0 0
        %1035 = vmatprep.subr.bf16.mxu0 0
        %1036 = vmatpush1.bf16.msra.mxu0 0
        %1037 = vmatprep.subr.bf16.mxu0 0
        %1038 = vmatpush1.bf16.msra.mxu0 0
        %1039 = vmatprep.subr.bf16.mxu0 0
        %1040 = vmatpush1.bf16.msra.mxu0 0
        %1041 = vmatprep.subr.bf16.mxu0 0
        %1042 = vmatpush1.bf16.msra.mxu0 0
        %1043 = vmatprep.subr.bf16.mxu0 0
        %1044 = vmatpush1.bf16.msra.mxu0 0
        %1045 = vmatprep.subr.bf16.mxu0 0
        %1046 = vmatpush1.bf16.msra.mxu0 0
        %1047 = vmatprep.subr.bf16.mxu0 0
        %1048 = vmatpush1.bf16.msra.mxu0 0
        %1049 = vmatprep.subr.bf16.mxu0 0
        %1050 = vmatpush1.bf16.msra.mxu0 0
        %1051 = vmatprep.subr.bf16.mxu0 0
        %1052 = vmatpush1.bf16.msra.mxu0 0
        %1053 = vmatprep.subr.bf16.mxu0 0
        %1054 = vmatpush1.bf16.msra.mxu0 0
        %1055 = vmatprep.subr.bf16.mxu0 0
        %1056 = vmatpush1.bf16.msra.mxu0 0
        %1057 = vmatprep.subr.bf16.mxu0 0
        %1058 = vmatpush1.bf16.msra.mxu0 0
        %1059 = vmatprep.mubr.bf16.mxu0 0
        %1060 = vmatmul.mubr.bf16.gmra.mrb[0].mxu0 %v1025
        %v1061 = vpop.f32.mrb[0].mxu0
        %v1062 = vadd.f32 %v1010, %v1061
        %v1063 = vpop.f32.mrb[0].mxu0
        %v1064 = vpop.f32.mrb[0].mxu0
        %v1065 = vpop.f32.mrb[0].mxu0
        %1066 = vdwg.mxu0
        %v1067 = vld [vmem:[%s435] sm:$0xff]
        %v1068 = vadd.f32 %v1067, %v1062
        %1069 = vst.msk [vmem:[#allocation3] sm:$0xff] %vm440, %v1068
        %v1070 = vld [vmem:[#allocation3] sm:$0xff]
        %v1071 = vld [vmem:[%s7] sm:$0x1]
        %v1072 = vld [vmem:[%s8] sm:$0x1]
        %v1073 = vsel %vm440, %v1070, 0.0
        %1074 = vadd.xlane.f32.xlu0 %v1073
        %v1075 = vpop.xlane.xlu0 %1074
        %v1076 = vmul.f32 %v1075, %v444
        %v1077 = vsub.f32 %v1070, %v1076
        %v1078 = vmul.f32 %v1077, %v1077
        %v1079 = vsel %vm440, %v1078, 0.0
        %1080 = vadd.xlane.f32.xlu0 %v1079
        %v1081 = vpop.xlane.xlu0 %1080
        %v1082 = vmul.f32 %v1081, %v444
        %v1083 = vadd.f32 %v1082, 1e-05
        %v1084 = vrsqrt.pop %v1083
        %v1085 = vmul.f32 %v1077, %v1084
        %v1087 = vlaneseq
        %v1088 = vshrl.u32 %v1087, 7
        %v1089 = vsub.s32 0, %v1088
        %v1090 = vrot.slane %v1071, %v1089
        %v1092 = vmul.f32 %v1085, %v1090
        %v1094 = vlaneseq
        %v1095 = vshrl.u32 %v1094, 7
        %v1096 = vsub.s32 0, %v1095
        %v1097 = vrot.slane %v1072, %v1096
        %v1099 = vadd.f32 %v1092, %v1097
        %v1100 = vpack.c.bf16 %v1099, %v1099
        %v1101 = vld [vmem:[%s9] sm:$0xf]
        %v1102 = vld [vmem:[%s9 + $0x4] sm:$0xf]
        %v1103 = vld [vmem:[%s9 + $0x8] sm:$0xf]
        %v1104 = vld [vmem:[%s9 + $0xc] sm:$0xf]
        %v1105 = vld [vmem:[%s10] sm:$0x1]
        %v1107 = vlaneseq
        %v1108 = vshrl.u32 %v1107, 7
        %v1109 = vsub.s32 0, %v1108
        %v1110 = vrot.slane %v1105, %v1109
        %v1116 = vunpack.c.l.b16 %v1101
        %v1117 = vunpack.c.l.b16 %v1102
        %v1118 = vunpack.c.l.b16 %v1103
        %v1119 = vunpack.c.l.b16 %v1104
        %v1120 = vpack.c.b16 %v1117, %v1116
        %v1121 = vpack.c.b16 %v1119, %v1118
        %v1125 = vsel %vm440, %v1100, 0
        %1127 = vmatprep.subr.bf16.mxu0 0
        %1128 = vmatpush1.bf16.msra.mxu0 %v1120
        %1129 = vmatprep.subr.bf16.mxu0 0
        %1130 = vmatpush1.bf16.msra.mxu0 %v1121
        %1131 = vmatprep.subr.bf16.mxu0 0
        %1132 = vmatpush1.bf16.msra.mxu0 0
        %1133 = vmatprep.subr.bf16.mxu0 0
        %1134 = vmatpush1.bf16.msra.mxu0 0
        %1135 = vmatprep.subr.bf16.mxu0 0
        %1136 = vmatpush1.bf16.msra.mxu0 0
        %1137 = vmatprep.subr.bf16.mxu0 0
        %1138 = vmatpush1.bf16.msra.mxu0 0
        %1139 = vmatprep.subr.bf16.mxu0 0
        %1140 = vmatpush1.bf16.msra.mxu0 0
        %1141 = vmatprep.subr.bf16.mxu0 0
        %1142 = vmatpush1.bf16.msra.mxu0 0
        %1143 = vmatprep.subr.bf16.mxu0 0
        %1144 = vmatpush1.bf16.msra.mxu0 0
        %1145 = vmatprep.subr.bf16.mxu0 0
        %1146 = vmatpush1.bf16.msra.mxu0 0
        %1147 = vmatprep.subr.bf16.mxu0 0
        %1148 = vmatpush1.bf16.msra.mxu0 0
        %1149 = vmatprep.subr.bf16.mxu0 0
        %1150 = vmatpush1.bf16.msra.mxu0 0
        %1151 = vmatprep.subr.bf16.mxu0 0
        %1152 = vmatpush1.bf16.msra.mxu0 0
        %1153 = vmatprep.subr.bf16.mxu0 0
        %1154 = vmatpush1.bf16.msra.mxu0 0
        %1155 = vmatprep.subr.bf16.mxu0 0
        %1156 = vmatpush1.bf16.msra.mxu0 0
        %1157 = vmatprep.subr.bf16.mxu0 0
        %1158 = vmatpush1.bf16.msra.mxu0 0
        %1159 = vmatprep.mubr.bf16.mxu0 0
        %1160 = vmatmul.mubr.bf16.gmra.mrb[0].mxu0 %v1125
        %v1161 = vpop.f32.mrb[0].mxu0
        %v1162 = vadd.f32 %v1110, %v1161
        %v1163 = vpop.f32.mrb[0].mxu0
        %v1164 = vpop.f32.mrb[0].mxu0
        %v1165 = vpop.f32.mrb[0].mxu0
        %1166 = vdwg.mxu0
        %v1167 = vmul.f32 %v1162, 1.702
        %v1168 = vxor.u32 %v1167, 2147483648
        %v1169 = vmul.f32 %v1168, 1.442695
        %v1170 = vpow.pop %v1169
        %v1171 = vadd.f32 %v1170, 1.0
        %v1172 = vrcp.pop %v1171
        %v1173 = vmul.f32 1.0, %v1172
        %v1174 = vmul.f32 %v1162, %v1173
        %v1175 = vpack.c.bf16 %v1174, %v1174
        %v1176 = vld [vmem:[%s11] sm:$0xf]
        %v1177 = vld [vmem:[%s11 + $0x4] sm:$0xf]
        %v1178 = vld [vmem:[%s11 + $0x8] sm:$0xf]
        %v1179 = vld [vmem:[%s11 + $0xc] sm:$0xf]
        %v1180 = vld [vmem:[%s11 + $0x10] sm:$0xf]
        %v1181 = vld [vmem:[%s11 + $0x14] sm:$0xf]
        %v1182 = vld [vmem:[%s11 + $0x18] sm:$0xf]
        %v1183 = vld [vmem:[%s11 + $0x1c] sm:$0xf]
        %v1184 = vld [vmem:[%s11 + $0x20] sm:$0xf]
        %v1185 = vld [vmem:[%s11 + $0x24] sm:$0xf]
        %v1186 = vld [vmem:[%s11 + $0x28] sm:$0xf]
        %v1187 = vld [vmem:[%s11 + $0x2c] sm:$0xf]
        %v1188 = vld [vmem:[%s11 + $0x30] sm:$0xf]
        %v1189 = vld [vmem:[%s11 + $0x34] sm:$0xf]
        %v1190 = vld [vmem:[%s11 + $0x38] sm:$0xf]
        %v1191 = vld [vmem:[%s11 + $0x3c] sm:$0xf]
        %v1192 = vld [vmem:[%s12] sm:$0x1]
        %v1194 = vlaneseq
        %v1195 = vshrl.u32 %v1194, 7
        %v1196 = vsub.s32 0, %v1195
        %v1197 = vrot.slane %v1192, %v1196
        %v1215 = vunpack.c.l.b16 %v1176
        %v1216 = vunpack.c.l.b16 %v1177
        %v1217 = vunpack.c.l.b16 %v1178
        %v1218 = vunpack.c.l.b16 %v1179
        %v1219 = vunpack.c.l.b16 %v1180
        %v1220 = vunpack.c.l.b16 %v1181
        %v1221 = vunpack.c.l.b16 %v1182
        %v1222 = vunpack.c.l.b16 %v1183
        %v1223 = vunpack.c.l.b16 %v1184
        %v1224 = vunpack.c.l.b16 %v1185
        %v1225 = vunpack.c.l.b16 %v1186
        %v1226 = vunpack.c.l.b16 %v1187
        %v1227 = vunpack.c.l.b16 %v1188
        %v1228 = vunpack.c.l.b16 %v1189
        %v1229 = vunpack.c.l.b16 %v1190
        %v1230 = vunpack.c.l.b16 %v1191
        %v1231 = vpack.c.b16 %v1216, %v1215
        %v1232 = vpack.c.b16 %v1218, %v1217
        %v1233 = vpack.c.b16 %v1220, %v1219
        %v1234 = vpack.c.b16 %v1222, %v1221
        %v1235 = vpack.c.b16 %v1224, %v1223
        %v1236 = vpack.c.b16 %v1226, %v1225
        %v1237 = vpack.c.b16 %v1228, %v1227
        %v1238 = vpack.c.b16 %v1230, %v1229
        %1247 = vmatprep.subr.bf16.mxu0 0
        %1248 = vmatpush1.bf16.msra.mxu0 %v1231
        %1249 = vmatprep.subr.bf16.mxu0 0
        %1250 = vmatpush1.bf16.msra.mxu0 %v1232
        %1251 = vmatprep.subr.bf16.mxu0 0
        %1252 = vmatpush1.bf16.msra.mxu0 %v1233
        %1253 = vmatprep.subr.bf16.mxu0 0
        %1254 = vmatpush1.bf16.msra.mxu0 %v1234
        %1255 = vmatprep.subr.bf16.mxu0 0
        %1256 = vmatpush1.bf16.msra.mxu0 %v1235
        %1257 = vmatprep.subr.bf16.mxu0 0
        %1258 = vmatpush1.bf16.msra.mxu0 %v1236
        %1259 = vmatprep.subr.bf16.mxu0 0
        %1260 = vmatpush1.bf16.msra.mxu0 %v1237
        %1261 = vmatprep.subr.bf16.mxu0 0
        %1262 = vmatpush1.bf16.msra.mxu0 %v1238
        %1263 = vmatprep.subr.bf16.mxu0 0
        %1264 = vmatpush1.bf16.msra.mxu0 0
        %1265 = vmatprep.subr.bf16.mxu0 0
        %1266 = vmatpush1.bf16.msra.mxu0 0
        %1267 = vmatprep.subr.bf16.mxu0 0
        %1268 = vmatpush1.bf16.msra.mxu0 0
        %1269 = vmatprep.subr.bf16.mxu0 0
        %1270 = vmatpush1.bf16.msra.mxu0 0
        %1271 = vmatprep.subr.bf16.mxu0 0
        %1272 = vmatpush1.bf16.msra.mxu0 0
        %1273 = vmatprep.subr.bf16.mxu0 0
        %1274 = vmatpush1.bf16.msra.mxu0 0
        %1275 = vmatprep.subr.bf16.mxu0 0
        %1276 = vmatpush1.bf16.msra.mxu0 0
        %1277 = vmatprep.subr.bf16.mxu0 0
        %1278 = vmatpush1.bf16.msra.mxu0 0
        %1279 = vmatprep.mubr.bf16.mxu0 0
        %1280 = vmatmul.mubr.bf16.gmra.mrb[0].mxu0 %v1175
        %v1281 = vpop.f32.mrb[0].mxu0
        %v1282 = vadd.f32 %v1197, %v1281
        %v1283 = vpop.f32.mrb[0].mxu0
        %v1284 = vpop.f32.mrb[0].mxu0
        %v1285 = vpop.f32.mrb[0].mxu0
        %1286 = vdwg.mxu0
        %v1287 = vadd.f32 %v1070, %v1282
        %1288 = vst.msk [vmem:[%s431] sm:$0xff] %vm440, %v1287
        %s1289 = sand.u32 %s313, 1
        %s1290 = scalar_lea.sflag [#allocation5], %s1289
        %s1291 = sand.u32 %s313, 1
        %s1292 = smul.addr %s1291, 8
        %s1293 = scalar_lea.vmem [#allocation4], %s1292
        // Predicated region
        $region73: #{tpu_custom_call.1} parent=71 // pred_check
          %p1294 = pneg %p323
        $region74: #{tpu_custom_call.1} parent=71 // pred_check_branch
          %1296 = sbr.rel (%p1294) target = $region76
        $region75: #{tpu_custom_call.1} parent=71 // pred_region
          %s1298 = ssub.s32 128, 128
          %1299 = vsyncadd %s1290, %s1298
          %s1300 = smul.addr %s27, 128
          %s1301 = scalar_lea.hbm %s13, %s1300
          %s1303 = sshll.u32 %s1293, 4
          %s1304 = int_to_ptr.vmem [resolvable:$true] %s1303
          %1306 = dma.vmem_to_hbm [thread:$0]  %s1304, 128, %s1301, %s1290
        $region76: #{tpu_custom_call.1} parent=71 // pred_fallthru
          _
      $region72: #{tpu_custom_call.1} parent=5 // pred_fallthru
        _
      %p1307 = scmp.le.s32.totalorder 2, %s22
      // Predicated region
      $region77: #{tpu_custom_call.1} parent=5 // pred_check
        %p1308 = pneg %p1307
      $region78: #{tpu_custom_call.1} parent=5 // pred_check_branch
        %1310 = sbr.rel (%p1308) target = $region80
      $region79: #{tpu_custom_call.1} parent=5 // pred_region
        %s1311 = ssub.s32 %s22, 2
        // Predicated region
        $region81: #{tpu_custom_call.1} parent=79 // pred_check
          %p1312 = pneg %p329
        $region82: #{tpu_custom_call.1} parent=79 // pred_check_branch
          %1314 = sbr.rel (%p1312) target = $region84
        $region83: #{tpu_custom_call.1} parent=79 // pred_region
          %s1315 = sand.u32 %s314, 1
          %s1316 = scalar_lea.sflag [#allocation5], %s1315
          %s1317 = sand.u32 %s314, 1
          %s1318 = smul.addr %s1317, 8
          %s1319 = scalar_lea.vmem [#allocation4], %s1318
          %1320 = dma.done %s1316, 128
        $region84: #{tpu_custom_call.1} parent=79 // pred_fallthru
          _
      $region80: #{tpu_custom_call.1} parent=5 // pred_fallthru
        _
    $region6: #{tpu_custom_call.1} parent=1 // loop_footer
      %s26 = sadd.s32 1, %s22
    $region7: #{tpu_custom_call.1} parent=1 // loop_footer_branch
      %21 = sbr.rel target = $region3
    $region8: #{tpu_custom_call.1} parent=1 // loop_exit
      _
    %1321 = vsyncpa [#allocation5], 1
    %s1322 = scalar_lea.sflag [#allocation5], 1
    %1323 = vsyncpa %s1322, 1

</llo_original>
